<compile_context>
chip_gen: v5e
topology: v5e:2x2
jax: 0.10.0
libtpu: 0.0.40
codegen_flags: <defaults>
</compile_context>

<pallas_src>
import numpy as np
import jax
import jax.numpy as jnp
from jax import lax
from jax.experimental import pallas as pl
from jax.experimental.pallas import tpu as pltpu

LANE = 128


def _round_up(x, m):
    return ((x + m - 1) // m) * m


def _pad_gate_columns(w, H, Hp):
    """w: (..., 4H), gate order i,f,g,o -> (..., 4Hp) with each gate block
    zero-padded into a 128-lane-aligned slot of width Hp."""
    lead = w.shape[:-1]
    out = jnp.zeros(lead + (4 * Hp,), w.dtype)
    for g in range(4):
        out = out.at[..., g * Hp:g * Hp + H].set(w[..., g * H:(g + 1) * H])
    return out


# ----------------------------- Pallas kernel ------------------------------- #

def lstm_kernel(vidx_ref, tidx_ref, pv_ref, pt_ref, w_hh_ref, h0_ref, c0_ref,
                out_ref, h_out_ref, c_out_ref):
    """Single-layer LSTM over the full sequence (batch = 1).

    Layout (Hp = hidden_dim padded to a multiple of 128, gate order i,f,g,o):
      vidx_ref/tidx_ref : (T,) int32 in SMEM (token indices)
      pv_ref  : (Vv, 4Hp)  value-embedding rows pre-projected by W_ih (+ bias)
      pt_ref  : (Vt, 4Hp)  type-embedding rows pre-projected by W_ih
      w_hh_ref: (Hp, 4Hp)  recurrent weights (padded rows/cols are zero)
      h0/c0   : (1, Hp)    initial state (padded lanes zero)
      out_ref : (T, Hp)    per-step hidden states
      h_out/c_out : (1, Hp)
    """
    Hp = h0_ref.shape[-1]
    T = out_ref.shape[0]

    # (1) Recurrent state carried as traced values -> no per-step scratch-ref
    #     VMEM round-trips on the serial dependency chain.
    h = h0_ref[...]
    c = c0_ref[...]

    # Full unroll over the small static T.  The per-t projected-embedding row
    # gathers below do not depend on h/c, so the scheduler hoists them off the
    # recurrent critical path; only dot(h, w_hh) + gate math stays serial.
    # TODO(synk): for large T switch to lax.fori_loop(..., unroll=8) carrying
    # (h, c) as loop state to bound instruction memory / vreg live ranges.
    for t in range(T):
        # (3) Fused "embedding lookup + input projection": one dynamic-sublane
        #     row load per table (indices from SMEM); bias folded into pv.
        xw_t = (pv_ref[pl.ds(vidx_ref[t], 1), :]
                + pt_ref[pl.ds(tidx_ref[t], 1), :])

        # Only the h-dependent matmul remains on the per-step critical path.
        # TODO(synk): if the bundle dump shows w_hh being re-pushed into the
        # MXU every step, pin it once with pltpu.matmul_push_rhs and use
        # matmul_acc_lhs / matmul_pop per step instead.
        gates = xw_t + jnp.dot(h, w_hh_ref[...],
                               preferred_element_type=jnp.float32)

        # PyTorch gate ordering i, f, g, o.  Each slice is a whole
        # 128-lane-aligned block -> plain vreg selection, no lane shuffles.
        i_g = jax.nn.sigmoid(gates[:, 0 * Hp:1 * Hp])
        f_g = jax.nn.sigmoid(gates[:, 1 * Hp:2 * Hp])
        g_g = jnp.tanh(gates[:, 2 * Hp:3 * Hp])
        o_g = jax.nn.sigmoid(gates[:, 3 * Hp:4 * Hp])

        c = f_g * c + i_g * g_g
        h = o_g * jnp.tanh(c)
        out_ref[pl.ds(t, 1), :] = h          # static sublane offset (unrolled)

    h_out_ref[...] = h
    c_out_ref[...] = c


def lstm_forward_pallas(value_idx, type_idx, pv, pt, w_hh_p, h0_p, c0_p):
    """Returns (out (T, Hp), h_n (1, Hp), c_n (1, Hp))."""
    T = value_idx.shape[0]
    Hp = h0_p.shape[-1]
    vmem = pl.BlockSpec(memory_space=pltpu.MemorySpace.VMEM)
    smem = pl.BlockSpec(memory_space=pltpu.MemorySpace.SMEM)
    # TODO(synk): for batched workloads add a leading "parallel" grid axis so
    # independent sentences use both TensorCores on v7x; at batch=1 a grid only
    # adds per-step overhead.
    return pl.pallas_call(
        lstm_kernel,
        out_shape=(jax.ShapeDtypeStruct((T, Hp), jnp.float32),
                   jax.ShapeDtypeStruct((1, Hp), jnp.float32),
                   jax.ShapeDtypeStruct((1, Hp), jnp.float32)),
        in_specs=[smem, smem, vmem, vmem, vmem, vmem, vmem],
        out_specs=(vmem, vmem, vmem),
    )(value_idx, type_idx, pv, pt, w_hh_p, h0_p, c0_p)


# Whole forward (state padding + kernel + unpadding) under jit.
@jax.jit
def _forward_impl(pv, pt, w_hh_p, value_idx, type_idx, h0, c0):
    H = h0.shape[-1]
    Hp = w_hh_p.shape[0]
    h0_p = jnp.pad(h0.reshape(1, H), ((0, 0), (0, Hp - H)))
    c0_p = jnp.pad(c0.reshape(1, H), ((0, 0), (0, Hp - H)))

    out, h_n, c_n = lstm_forward_pallas(value_idx, type_idx, pv, pt,
                                        w_hh_p, h0_p, c0_p)

    lstm_out = out[:, None, :H]     # (T, 1, H)
    lstm_h = h_n[None, :, :H]       # (1, 1, H)
    lstm_c = c_n[None, :, :H]       # (1, 1, H)
    return lstm_out, lstm_h, lstm_c


# --------------------------- Module equivalent ------------------------------ #

class LSTMComponent:
    """JAX/Pallas port of the PyTorch LSTM_component module (forward only)."""

    def __init__(self, vocab_value_size, value_dim, vocab_type_size, type_dim,
                 hidden_dim, batch_size, key):
        self.hidden_dim = hidden_dim
        self.batch_size = batch_size
        In = value_dim + type_dim
        H = hidden_dim
        k = 1.0 / np.sqrt(hidden_dim)
        keys = jax.random.split(key, 6)
        # Deterministic parameter init (normal embeddings, PyTorch-style LSTM init).
        self.value_embeddings = jax.random.normal(
            keys[0], (vocab_value_size, value_dim), jnp.float32)
        self.type_embeddings = jax.random.normal(
            keys[1], (vocab_type_size, type_dim), jnp.float32)
        self.w_ih = jax.random.uniform(keys[2], (4 * H, In), jnp.float32, -k, k)
        self.w_hh = jax.random.uniform(keys[3], (4 * H, H), jnp.float32, -k, k)
        self.b_ih = jax.random.uniform(keys[4], (4 * H,), jnp.float32, -k, k)
        self.b_hh = jax.random.uniform(keys[5], (4 * H,), jnp.float32, -k, k)

        # --- One-time (inference-only) weight prep ------------------------- #
        # Each gate block lands in its own 128-lane-aligned slot; padded
        # rows/cols are exactly zero so padded lanes of h/c stay exactly 0 and
        # the recurrence is numerically unchanged.
        self.Hp = _round_up(H, LANE)
        Hp = self.Hp
        hi = lax.Precision.HIGHEST

        w_ih_p = _pad_gate_columns(self.w_ih.T, H, Hp)                # (In, 4Hp)
        b_p = _pad_ate = _pad_gate_columns(
            (self.b_ih + self.b_hh).reshape(1, -1), H, Hp)            # (1, 4Hp)

        # torch forward: embeds = cat([type_emb[sentence[1]], value_emb[sentence[0]]])
        # -> input features [0:type_dim) use type_embeddings, [type_dim:) value_embeddings.
        w_t_part = w_ih_p[:type_dim, :]                               # (type_dim, 4Hp)
        w_v_part = w_ih_p[type_dim:, :]                               # (value_dim, 4Hp)

        # Projected embedding tables (bias folded into the value table).
        # TODO(synk): valid only while embeddings / W_ih are frozen (inference);
        # for training, project inside the kernel instead.
        self.p_type = jnp.dot(self.type_embeddings, w_t_part,
                              precision=hi, preferred_element_type=jnp.float32)
        self.p_value = jnp.dot(self.value_embeddings, w_v_part,
                               precision=hi,
                               preferred_element_type=jnp.float32) + b_p

        w_hh_t = jnp.pad(self.w_hh.T, ((0, Hp - H), (0, 0)))          # (Hp, 4H)
        self.w_hh_p = _pad_gate_columns(w_hh_t, H, Hp)                # (Hp, 4Hp)

    def init_hidden(self):
        return (jnp.zeros((1, self.batch_size, self.hidden_dim), jnp.float32),
                jnp.zeros((1, self.batch_size, self.hidden_dim), jnp.float32))

    def forward(self, sentence, hc):
        # The torch forward views the embeddings as (T, 1, -1) => batch must be 1.
        assert hc[0].shape[:2] == (1, 1) and hc[1].shape[:2] == (1, 1), \
            "LSTMComponent Pallas kernel only supports batch_size == 1"
        return _forward_impl(self.p_value, self.p_type, self.w_hh_p,
                             sentence[0], sentence[1], hc[0], hc[1])


# ------------------------------ Reference ----------------------------------- #

def lstm_ref(x, w_ih, w_hh, b_ih, b_hh, h0, c0):
    H = h0.shape[-1]
    b = b_ih + b_hh
    hi = lax.Precision.HIGHEST

    def step(carry, x_t):
        h, c = carry
        gates = (jnp.dot(x_t, w_ih.T, precision=hi)
                 + jnp.dot(h, w_hh.T, precision=hi) + b)
        i = jax.nn.sigmoid(gates[0:H])
        f = jax.nn.sigmoid(gates[H:2 * H])
        g = jnp.tanh(gates[2 * H:3 * H])
        o = jax.nn.sigmoid(gates[3 * H:4 * H])
        c = f * c + i * g
        h = o * jnp.tanh(c)
        return (h, c), h

    (h_n, c_n), outs = lax.scan(step, (h0[0], c0[0]), x)
    return outs, h_n[None, :], c_n[None, :]


# --------------------------------- Main ------------------------------------- #

if __name__ == "__main__":
    vocab_value_size, value_dim = 50, 12
    vocab_type_size, type_dim = 30, 12
    hidden_dim = 32
    batch_size = 1
    seq_len = 8

    key = jax.random.PRNGKey(0)
    k_mod, k_val, k_typ = jax.random.split(key, 3)

    model = LSTMComponent(vocab_value_size, value_dim, vocab_type_size,
                          type_dim, hidden_dim, batch_size, k_mod)

    value_idx = jax.random.randint(k_val, (seq_len,), 0, vocab_value_size, jnp.int32)
    type_idx = jax.random.randint(k_typ, (seq_len,), 0, vocab_type_size, jnp.int32)
    sentence = (value_idx, type_idx)
    hc = model.init_hidden()

    lstm_out, lstm_h, lstm_c = model.forward(sentence, hc)
    jax.block_until_ready((lstm_out, lstm_h, lstm_c))

    # Correctness check against a pure-JAX LSTM reference (unpadded weights).
    embeds_type = model.value_embeddings[sentence[0]]    # (T, value_dim)
    embeds_value = model.type_embeddings[sentence[1]]    # (T, type_dim)
    x = jnp.concatenate([embeds_value, embeds_type], axis=1)
    ref_out, ref_h, ref_c = lstm_ref(x, model.w_ih, model.w_hh,
                                     model.b_ih, model.b_hh,
                                     hc[0].reshape(1, hidden_dim),
                                     hc[1].reshape(1, hidden_dim))
    np.testing.assert_allclose(np.asarray(lstm_out[:, 0, :]), np.asarray(ref_out),
                               rtol=1e-5, atol=1e-5)
    np.testing.assert_allclose(np.asarray(lstm_h[0]), np.asarray(ref_h),
                               rtol=1e-5, atol=1e-5)
    np.testing.assert_allclose(np.asarray(lstm_c[0]), np.asarray(ref_c),
                               rtol=1e-5, atol=1e-5)

    print("KERNEL_OK")
</pallas_src>

<mosaic_0001>
module attributes {stable_mosaic.version = 11 : i64} {
  func.func @lstm_kernel(%arg0: memref<8xi32, #tpu.memory_space<smem>>, %arg1: memref<8xi32, #tpu.memory_space<smem>>, %arg2: memref<50x512xf32, #tpu.memory_space<vmem>>, %arg3: memref<30x512xf32, #tpu.memory_space<vmem>>, %arg4: memref<128x512xf32, #tpu.memory_space<vmem>>, %arg5: memref<1x128xf32, #tpu.memory_space<vmem>>, %arg6: memref<1x128xf32, #tpu.memory_space<vmem>>, %arg7: memref<8x128xf32, #tpu.memory_space<vmem>>, %arg8: memref<1x128xf32, #tpu.memory_space<vmem>>, %arg9: memref<1x128xf32, #tpu.memory_space<vmem>>) attributes {dimension_semantics = [], scalar_prefetch = 0 : i64, scratch_operands = 0 : i64, tpu.core_type = #tpu.core_type<tc>} {
    %c0 = arith.constant 0 : index
    %c0_0 = arith.constant 0 : index
    %0 = vector.load %arg5[%c0, %c0_0] : memref<1x128xf32, #tpu.memory_space<vmem>>, vector<1x128xf32>
    %c0_1 = arith.constant 0 : index
    %c0_2 = arith.constant 0 : index
    %1 = vector.load %arg6[%c0_1, %c0_2] : memref<1x128xf32, #tpu.memory_space<vmem>>, vector<1x128xf32>
    %c0_3 = arith.constant 0 : index
    %2 = memref.load %arg0[%c0_3] : memref<8xi32, #tpu.memory_space<smem>>
    %3 = arith.index_cast %2 : i32 to index
    %c0_4 = arith.constant 0 : index
    %4 = vector.load %arg2[%3, %c0_4] : memref<50x512xf32, #tpu.memory_space<vmem>>, vector<1x512xf32>
    %c0_5 = arith.constant 0 : index
    %5 = memref.load %arg1[%c0_5] : memref<8xi32, #tpu.memory_space<smem>>
    %6 = arith.index_cast %5 : i32 to index
    %c0_6 = arith.constant 0 : index
    %7 = vector.load %arg3[%6, %c0_6] : memref<30x512xf32, #tpu.memory_space<vmem>>, vector<1x512xf32>
    %8 = arith.addf %4, %7 : vector<1x512xf32>
    %c0_7 = arith.constant 0 : index
    %c0_8 = arith.constant 0 : index
    %9 = vector.load %arg4[%c0_7, %c0_8] : memref<128x512xf32, #tpu.memory_space<vmem>>, vector<128x512xf32>
    %cst = arith.constant dense<0.000000e+00> : vector<1x512xf32>
    %10 = tpu.matmul %0, %9, %cst {dimension_numbers = #tpu.dot_dimension_numbers<[1], [0], [0], [1], [0, 0, 1, 1], [], []>} : vector<1x128xf32>, vector<128x512xf32>, vector<1x512xf32> -> vector<1x512xf32>
    %11 = arith.addf %8, %10 : vector<1x512xf32>
    %12 = vector.extract_strided_slice %11 {offsets = [0, 0], sizes = [1, 128], strides = [1, 1]} : vector<1x512xf32> to vector<1x128xf32>
    %13 = arith.negf %12 : vector<1x128xf32>
    %14 = math.exp %13 : vector<1x128xf32>
    %cst_9 = arith.constant 1.000000e+00 : f32
    %15 = vector.broadcast %cst_9 : f32 to vector<1x128xf32>
    %16 = arith.addf %15, %14 : vector<1x128xf32>
    %17 = arith.divf %15, %16 : vector<1x128xf32>
    %18 = vector.extract_strided_slice %11 {offsets = [0, 128], sizes = [1, 128], strides = [1, 1]} : vector<1x512xf32> to vector<1x128xf32>
    %19 = arith.negf %18 : vector<1x128xf32>
    %20 = math.exp %19 : vector<1x128xf32>
    %cst_10 = arith.constant 1.000000e+00 : f32
    %21 = vector.broadcast %cst_10 : f32 to vector<1x128xf32>
    %22 = arith.addf %21, %20 : vector<1x128xf32>
    %23 = arith.divf %21, %22 : vector<1x128xf32>
    %24 = vector.extract_strided_slice %11 {offsets = [0, 256], sizes = [1, 128], strides = [1, 1]} : vector<1x512xf32> to vector<1x128xf32>
    %25 = math.tanh %24 : vector<1x128xf32>
    %26 = vector.extract_strided_slice %11 {offsets = [0, 384], sizes = [1, 128], strides = [1, 1]} : vector<1x512xf32> to vector<1x128xf32>
    %27 = arith.negf %26 : vector<1x128xf32>
    %28 = math.exp %27 : vector<1x128xf32>
    %cst_11 = arith.constant 1.000000e+00 : f32
    %29 = vector.broadcast %cst_11 : f32 to vector<1x128xf32>
    %30 = arith.addf %29, %28 : vector<1x128xf32>
    %31 = arith.divf %29, %30 : vector<1x128xf32>
    %32 = arith.mulf %23, %1 : vector<1x128xf32>
    %33 = arith.mulf %17, %25 : vector<1x128xf32>
    %34 = arith.addf %32, %33 : vector<1x128xf32>
    %35 = math.tanh %34 : vector<1x128xf32>
    %36 = arith.mulf %31, %35 : vector<1x128xf32>
    %c0_12 = arith.constant 0 : index
    %c0_13 = arith.constant 0 : index
    %37 = vector.load %arg7[%c0_12, %c0_13] : memref<8x128xf32, #tpu.memory_space<vmem>>, vector<1x128xf32>
    tpu.vector_store %arg7[%c0_12, %c0_13], %36 {strides = array<i32>} : memref<8x128xf32, #tpu.memory_space<vmem>>, vector<1x128xf32>,
    %c1 = arith.constant 1 : index
    %38 = memref.load %arg0[%c1] : memref<8xi32, #tpu.memory_space<smem>>
    %39 = arith.index_cast %38 : i32 to index
    %c0_14 = arith.constant 0 : index
    %40 = vector.load %arg2[%39, %c0_14] : memref<50x512xf32, #tpu.memory_space<vmem>>, vector<1x512xf32>
    %c1_15 = arith.constant 1 : index
    %41 = memref.load %arg1[%c1_15] : memref<8xi32, #tpu.memory_space<smem>>
    %42 = arith.index_cast %41 : i32 to index
    %c0_16 = arith.constant 0 : index
    %43 = vector.load %arg3[%42, %c0_16] : memref<30x512xf32, #tpu.memory_space<vmem>>, vector<1x512xf32>
    %44 = arith.addf %40, %43 : vector<1x512xf32>
    %c0_17 = arith.constant 0 : index
    %c0_18 = arith.constant 0 : index
    %45 = vector.load %arg4[%c0_17, %c0_18] : memref<128x512xf32, #tpu.memory_space<vmem>>, vector<128x512xf32>
    %cst_19 = arith.constant dense<0.000000e+00> : vector<1x512xf32>
    %46 = tpu.matmul %36, %45, %cst_19 {dimension_numbers = #tpu.dot_dimension_numbers<[1], [0], [0], [1], [0, 0, 1, 1], [], []>} : vector<1x128xf32>, vector<128x512xf32>, vector<1x512xf32> -> vector<1x512xf32>
    %47 = arith.addf %44, %46 : vector<1x512xf32>
    %48 = vector.extract_strided_slice %47 {offsets = [0, 0], sizes = [1, 128], strides = [1, 1]} : vector<1x512xf32> to vector<1x128xf32>
    %49 = arith.negf %48 : vector<1x128xf32>
    %50 = math.exp %49 : vector<1x128xf32>
    %cst_20 = arith.constant 1.000000e+00 : f32
    %51 = vector.broadcast %cst_20 : f32 to vector<1x128xf32>
    %52 = arith.addf %51, %50 : vector<1x128xf32>
    %53 = arith.divf %51, %52 : vector<1x128xf32>
    %54 = vector.extract_strided_slice %47 {offsets = [0, 128], sizes = [1, 128], strides = [1, 1]} : vector<1x512xf32> to vector<1x128xf32>
    %55 = arith.negf %54 : vector<1x128xf32>
    %56 = math.exp %55 : vector<1x128xf32>
    %cst_21 = arith.constant 1.000000e+00 : f32
    %57 = vector.broadcast %cst_21 : f32 to vector<1x128xf32>
    %58 = arith.addf %57, %56 : vector<1x128xf32>
    %59 = arith.divf %57, %58 : vector<1x128xf32>
    %60 = vector.extract_strided_slice %47 {offsets = [0, 256], sizes = [1, 128], strides = [1, 1]} : vector<1x512xf32> to vector<1x128xf32>
    %61 = math.tanh %60 : vector<1x128xf32>
    %62 = vector.extract_strided_slice %47 {offsets = [0, 384], sizes = [1, 128], strides = [1, 1]} : vector<1x512xf32> to vector<1x128xf32>
    %63 = arith.negf %62 : vector<1x128xf32>
    %64 = math.exp %63 : vector<1x128xf32>
    %cst_22 = arith.constant 1.000000e+00 : f32
    %65 = vector.broadcast %cst_22 : f32 to vector<1x128xf32>
    %66 = arith.addf %65, %64 : vector<1x128xf32>
    %67 = arith.divf %65, %66 : vector<1x128xf32>
    %68 = arith.mulf %59, %34 : vector<1x128xf32>
    %69 = arith.mulf %53, %61 : vector<1x128xf32>
    %70 = arith.addf %68, %69 : vector<1x128xf32>
    %71 = math.tanh %70 : vector<1x128xf32>
    %72 = arith.mulf %67, %71 : vector<1x128xf32>
    %c1_23 = arith.constant 1 : index
    %c0_24 = arith.constant 0 : index
    %73 = vector.load %arg7[%c1_23, %c0_24] : memref<8x128xf32, #tpu.memory_space<vmem>>, vector<1x128xf32>
    tpu.vector_store %arg7[%c1_23, %c0_24], %72 {strides = array<i32>} : memref<8x128xf32, #tpu.memory_space<vmem>>, vector<1x128xf32>,
    %c2 = arith.constant 2 : index
    %74 = memref.load %arg0[%c2] : memref<8xi32, #tpu.memory_space<smem>>
    %75 = arith.index_cast %74 : i32 to index
    %c0_25 = arith.constant 0 : index
    %76 = vector.load %arg2[%75, %c0_25] : memref<50x512xf32, #tpu.memory_space<vmem>>, vector<1x512xf32>
    %c2_26 = arith.constant 2 : index
    %77 = memref.load %arg1[%c2_26] : memref<8xi32, #tpu.memory_space<smem>>
    %78 = arith.index_cast %77 : i32 to index
    %c0_27 = arith.constant 0 : index
    %79 = vector.load %arg3[%78, %c0_27] : memref<30x512xf32, #tpu.memory_space<vmem>>, vector<1x512xf32>
    %80 = arith.addf %76, %79 : vector<1x512xf32>
    %c0_28 = arith.constant 0 : index
    %c0_29 = arith.constant 0 : index
    %81 = vector.load %arg4[%c0_28, %c0_29] : memref<128x512xf32, #tpu.memory_space<vmem>>, vector<128x512xf32>
    %cst_30 = arith.constant dense<0.000000e+00> : vector<1x512xf32>
    %82 = tpu.matmul %72, %81, %cst_30 {dimension_numbers = #tpu.dot_dimension_numbers<[1], [0], [0], [1], [0, 0, 1, 1], [], []>} : vector<1x128xf32>, vector<128x512xf32>, vector<1x512xf32> -> vector<1x512xf32>
    %83 = arith.addf %80, %82 : vector<1x512xf32>
    %84 = vector.extract_strided_slice %83 {offsets = [0, 0], sizes = [1, 128], strides = [1, 1]} : vector<1x512xf32> to vector<1x128xf32>
    %85 = arith.negf %84 : vector<1x128xf32>
    %86 = math.exp %85 : vector<1x128xf32>
    %cst_31 = arith.constant 1.000000e+00 : f32
    %87 = vector.broadcast %cst_31 : f32 to vector<1x128xf32>
    %88 = arith.addf %87, %86 : vector<1x128xf32>
    %89 = arith.divf %87, %88 : vector<1x128xf32>
    %90 = vector.extract_strided_slice %83 {offsets = [0, 128], sizes = [1, 128], strides = [1, 1]} : vector<1x512xf32> to vector<1x128xf32>
    %91 = arith.negf %90 : vector<1x128xf32>
    %92 = math.exp %91 : vector<1x128xf32>
    %cst_32 = arith.constant 1.000000e+00 : f32
    %93 = vector.broadcast %cst_32 : f32 to vector<1x128xf32>
    %94 = arith.addf %93, %92 : vector<1x128xf32>
    %95 = arith.divf %93, %94 : vector<1x128xf32>
    %96 = vector.extract_strided_slice %83 {offsets = [0, 256], sizes = [1, 128], strides = [1, 1]} : vector<1x512xf32> to vector<1x128xf32>
    %97 = math.tanh %96 : vector<1x128xf32>
    %98 = vector.extract_strided_slice %83 {offsets = [0, 384], sizes = [1, 128], strides = [1, 1]} : vector<1x512xf32> to vector<1x128xf32>
    %99 = arith.negf %98 : vector<1x128xf32>
    %100 = math.exp %99 : vector<1x128xf32>
    %cst_33 = arith.constant 1.000000e+00 : f32
    %101 = vector.broadcast %cst_33 : f32 to vector<1x128xf32>
    %102 = arith.addf %101, %100 : vector<1x128xf32>
    %103 = arith.divf %101, %102 : vector<1x128xf32>
    %104 = arith.mulf %95, %70 : vector<1x128xf32>
    %105 = arith.mulf %89, %97 : vector<1x128xf32>
    %106 = arith.addf %104, %105 : vector<1x128xf32>
    %107 = math.tanh %106 : vector<1x128xf32>
    %108 = arith.mulf %103, %107 : vector<1x128xf32>
    %c2_34 = arith.constant 2 : index
    %c0_35 = arith.constant 0 : index
    %109 = vector.load %arg7[%c2_34, %c0_35] : memref<8x128xf32, #tpu.memory_space<vmem>>, vector<1x128xf32>
    tpu.vector_store %arg7[%c2_34, %c0_35], %108 {strides = array<i32>} : memref<8x128xf32, #tpu.memory_space<vmem>>, vector<1x128xf32>,
    %c3 = arith.constant 3 : index
    %110 = memref.load %arg0[%c3] : memref<8xi32, #tpu.memory_space<smem>>
    %111 = arith.index_cast %110 : i32 to index
    %c0_36 = arith.constant 0 : index
    %112 = vector.load %arg2[%111, %c0_36] : memref<50x512xf32, #tpu.memory_space<vmem>>, vector<1x512xf32>
    %c3_37 = arith.constant 3 : index
    %113 = memref.load %arg1[%c3_37] : memref<8xi32, #tpu.memory_space<smem>>
    %114 = arith.index_cast %113 : i32 to index
    %c0_38 = arith.constant 0 : index
    %115 = vector.load %arg3[%114, %c0_38] : memref<30x512xf32, #tpu.memory_space<vmem>>, vector<1x512xf32>
    %116 = arith.addf %112, %115 : vector<1x512xf32>
    %c0_39 = arith.constant 0 : index
    %c0_40 = arith.constant 0 : index
    %117 = vector.load %arg4[%c0_39, %c0_40] : memref<128x512xf32, #tpu.memory_space<vmem>>, vector<128x512xf32>
    %cst_41 = arith.constant dense<0.000000e+00> : vector<1x512xf32>
    %118 = tpu.matmul %108, %117, %cst_41 {dimension_numbers = #tpu.dot_dimension_numbers<[1], [0], [0], [1], [0, 0, 1, 1], [], []>} : vector<1x128xf32>, vector<128x512xf32>, vector<1x512xf32> -> vector<1x512xf32>
    %119 = arith.addf %116, %118 : vector<1x512xf32>
    %120 = vector.extract_strided_slice %119 {offsets = [0, 0], sizes = [1, 128], strides = [1, 1]} : vector<1x512xf32> to vector<1x128xf32>
    %121 = arith.negf %120 : vector<1x128xf32>
    %122 = math.exp %121 : vector<1x128xf32>
    %cst_42 = arith.constant 1.000000e+00 : f32
    %123 = vector.broadcast %cst_42 : f32 to vector<1x128xf32>
    %124 = arith.addf %123, %122 : vector<1x128xf32>
    %125 = arith.divf %123, %124 : vector<1x128xf32>
    %126 = vector.extract_strided_slice %119 {offsets = [0, 128], sizes = [1, 128], strides = [1, 1]} : vector<1x512xf32> to vector<1x128xf32>
    %127 = arith.negf %126 : vector<1x128xf32>
    %128 = math.exp %127 : vector<1x128xf32>
    %cst_43 = arith.constant 1.000000e+00 : f32
    %129 = vector.broadcast %cst_43 : f32 to vector<1x128xf32>
    %130 = arith.addf %129, %128 : vector<1x128xf32>
    %131 = arith.divf %129, %130 : vector<1x128xf32>
    %132 = vector.extract_strided_slice %119 {offsets = [0, 256], sizes = [1, 128], strides = [1, 1]} : vector<1x512xf32> to vector<1x128xf32>
    %133 = math.tanh %132 : vector<1x128xf32>
    %134 = vector.extract_strided_slice %119 {offsets = [0, 384], sizes = [1, 128], strides = [1, 1]} : vector<1x512xf32> to vector<1x128xf32>
    %135 = arith.negf %134 : vector<1x128xf32>
    %136 = math.exp %135 : vector<1x128xf32>
    %cst_44 = arith.constant 1.000000e+00 : f32
    %137 = vector.broadcast %cst_44 : f32 to vector<1x128xf32>
    %138 = arith.addf %137, %136 : vector<1x128xf32>
    %139 = arith.divf %137, %138 : vector<1x128xf32>
    %140 = arith.mulf %131, %106 : vector<1x128xf32>
    %141 = arith.mulf %125, %133 : vector<1x128xf32>
    %142 = arith.addf %140, %141 : vector<1x128xf32>
    %143 = math.tanh %142 : vector<1x128xf32>
    %144 = arith.mulf %139, %143 : vector<1x128xf32>
    %c3_45 = arith.constant 3 : index
    %c0_46 = arith.constant 0 : index
    %145 = vector.load %arg7[%c3_45, %c0_46] : memref<8x128xf32, #tpu.memory_space<vmem>>, vector<1x128xf32>
    tpu.vector_store %arg7[%c3_45, %c0_46], %144 {strides = array<i32>} : memref<8x128xf32, #tpu.memory_space<vmem>>, vector<1x128xf32>,
    %c4 = arith.constant 4 : index
    %146 = memref.load %arg0[%c4] : memref<8xi32, #tpu.memory_space<smem>>
    %147 = arith.index_cast %146 : i32 to index
    %c0_47 = arith.constant 0 : index
    %148 = vector.load %arg2[%147, %c0_47] : memref<50x512xf32, #tpu.memory_space<vmem>>, vector<1x512xf32>
    %c4_48 = arith.constant 4 : index
    %149 = memref.load %arg1[%c4_48] : memref<8xi32, #tpu.memory_space<smem>>
    %150 = arith.index_cast %149 : i32 to index
    %c0_49 = arith.constant 0 : index
    %151 = vector.load %arg3[%150, %c0_49] : memref<30x512xf32, #tpu.memory_space<vmem>>, vector<1x512xf32>
    %152 = arith.addf %148, %151 : vector<1x512xf32>
    %c0_50 = arith.constant 0 : index
    %c0_51 = arith.constant 0 : index
    %153 = vector.load %arg4[%c0_50, %c0_51] : memref<128x512xf32, #tpu.memory_space<vmem>>, vector<128x512xf32>
    %cst_52 = arith.constant dense<0.000000e+00> : vector<1x512xf32>
    %154 = tpu.matmul %144, %153, %cst_52 {dimension_numbers = #tpu.dot_dimension_numbers<[1], [0], [0], [1], [0, 0, 1, 1], [], []>} : vector<1x128xf32>, vector<128x512xf32>, vector<1x512xf32> -> vector<1x512xf32>
    %155 = arith.addf %152, %154 : vector<1x512xf32>
    %156 = vector.extract_strided_slice %155 {offsets = [0, 0], sizes = [1, 128], strides = [1, 1]} : vector<1x512xf32> to vector<1x128xf32>
    %157 = arith.negf %156 : vector<1x128xf32>
    %158 = math.exp %157 : vector<1x128xf32>
    %cst_53 = arith.constant 1.000000e+00 : f32
    %159 = vector.broadcast %cst_53 : f32 to vector<1x128xf32>
    %160 = arith.addf %159, %158 : vector<1x128xf32>
    %161 = arith.divf %159, %160 : vector<1x128xf32>
    %162 = vector.extract_strided_slice %155 {offsets = [0, 128], sizes = [1, 128], strides = [1, 1]} : vector<1x512xf32> to vector<1x128xf32>
    %163 = arith.negf %162 : vector<1x128xf32>
    %164 = math.exp %163 : vector<1x128xf32>
    %cst_54 = arith.constant 1.000000e+00 : f32
    %165 = vector.broadcast %cst_54 : f32 to vector<1x128xf32>
    %166 = arith.addf %165, %164 : vector<1x128xf32>
    %167 = arith.divf %165, %166 : vector<1x128xf32>
    %168 = vector.extract_strided_slice %155 {offsets = [0, 256], sizes = [1, 128], strides = [1, 1]} : vector<1x512xf32> to vector<1x128xf32>
    %169 = math.tanh %168 : vector<1x128xf32>
    %170 = vector.extract_strided_slice %155 {offsets = [0, 384], sizes = [1, 128], strides = [1, 1]} : vector<1x512xf32> to vector<1x128xf32>
    %171 = arith.negf %170 : vector<1x128xf32>
    %172 = math.exp %171 : vector<1x128xf32>
    %cst_55 = arith.constant 1.000000e+00 : f32
    %173 = vector.broadcast %cst_55 : f32 to vector<1x128xf32>
    %174 = arith.addf %173, %172 : vector<1x128xf32>
    %175 = arith.divf %173, %174 : vector<1x128xf32>
    %176 = arith.mulf %167, %142 : vector<1x128xf32>
    %177 = arith.mulf %161, %169 : vector<1x128xf32>
    %178 = arith.addf %176, %177 : vector<1x128xf32>
    %179 = math.tanh %178 : vector<1x128xf32>
    %180 = arith.mulf %175, %179 : vector<1x128xf32>
    %c4_56 = arith.constant 4 : index
    %c0_57 = arith.constant 0 : index
    %181 = vector.load %arg7[%c4_56, %c0_57] : memref<8x128xf32, #tpu.memory_space<vmem>>, vector<1x128xf32>
    tpu.vector_store %arg7[%c4_56, %c0_57], %180 {strides = array<i32>} : memref<8x128xf32, #tpu.memory_space<vmem>>, vector<1x128xf32>,
    %c5 = arith.constant 5 : index
    %182 = memref.load %arg0[%c5] : memref<8xi32, #tpu.memory_space<smem>>
    %183 = arith.index_cast %182 : i32 to index
    %c0_58 = arith.constant 0 : index
    %184 = vector.load %arg2[%183, %c0_58] : memref<50x512xf32, #tpu.memory_space<vmem>>, vector<1x512xf32>
    %c5_59 = arith.constant 5 : index
    %185 = memref.load %arg1[%c5_59] : memref<8xi32, #tpu.memory_space<smem>>
    %186 = arith.index_cast %185 : i32 to index
    %c0_60 = arith.constant 0 : index
    %187 = vector.load %arg3[%186, %c0_60] : memref<30x512xf32, #tpu.memory_space<vmem>>, vector<1x512xf32>
    %188 = arith.addf %184, %187 : vector<1x512xf32>
    %c0_61 = arith.constant 0 : index
    %c0_62 = arith.constant 0 : index
    %189 = vector.load %arg4[%c0_61, %c0_62] : memref<128x512xf32, #tpu.memory_space<vmem>>, vector<128x512xf32>
    %cst_63 = arith.constant dense<0.000000e+00> : vector<1x512xf32>
    %190 = tpu.matmul %180, %189, %cst_63 {dimension_numbers = #tpu.dot_dimension_numbers<[1], [0], [0], [1], [0, 0, 1, 1], [], []>} : vector<1x128xf32>, vector<128x512xf32>, vector<1x512xf32> -> vector<1x512xf32>
    %191 = arith.addf %188, %190 : vector<1x512xf32>
    %192 = vector.extract_strided_slice %191 {offsets = [0, 0], sizes = [1, 128], strides = [1, 1]} : vector<1x512xf32> to vector<1x128xf32>
    %193 = arith.negf %192 : vector<1x128xf32>
    %194 = math.exp %193 : vector<1x128xf32>
    %cst_64 = arith.constant 1.000000e+00 : f32
    %195 = vector.broadcast %cst_64 : f32 to vector<1x128xf32>
    %196 = arith.addf %195, %194 : vector<1x128xf32>
    %197 = arith.divf %195, %196 : vector<1x128xf32>
    %198 = vector.extract_strided_slice %191 {offsets = [0, 128], sizes = [1, 128], strides = [1, 1]} : vector<1x512xf32> to vector<1x128xf32>
    %199 = arith.negf %198 : vector<1x128xf32>
    %200 = math.exp %199 : vector<1x128xf32>
    %cst_65 = arith.constant 1.000000e+00 : f32
    %201 = vector.broadcast %cst_65 : f32 to vector<1x128xf32>
    %202 = arith.addf %201, %200 : vector<1x128xf32>
    %203 = arith.divf %201, %202 : vector<1x128xf32>
    %204 = vector.extract_strided_slice %191 {offsets = [0, 256], sizes = [1, 128], strides = [1, 1]} : vector<1x512xf32> to vector<1x128xf32>
    %205 = math.tanh %204 : vector<1x128xf32>
    %206 = vector.extract_strided_slice %191 {offsets = [0, 384], sizes = [1, 128], strides = [1, 1]} : vector<1x512xf32> to vector<1x128xf32>
    %207 = arith.negf %206 : vector<1x128xf32>
    %208 = math.exp %207 : vector<1x128xf32>
    %cst_66 = arith.constant 1.000000e+00 : f32
    %209 = vector.broadcast %cst_66 : f32 to vector<1x128xf32>
    %210 = arith.addf %209, %208 : vector<1x128xf32>
    %211 = arith.divf %209, %210 : vector<1x128xf32>
    %212 = arith.mulf %203, %178 : vector<1x128xf32>
    %213 = arith.mulf %197, %205 : vector<1x128xf32>
    %214 = arith.addf %212, %213 : vector<1x128xf32>
    %215 = math.tanh %214 : vector<1x128xf32>
    %216 = arith.mulf %211, %215 : vector<1x128xf32>
    %c5_67 = arith.constant 5 : index
    %c0_68 = arith.constant 0 : index
    %217 = vector.load %arg7[%c5_67, %c0_68] : memref<8x128xf32, #tpu.memory_space<vmem>>, vector<1x128xf32>
    tpu.vector_store %arg7[%c5_67, %c0_68], %216 {strides = array<i32>} : memref<8x128xf32, #tpu.memory_space<vmem>>, vector<1x128xf32>,
    %c6 = arith.constant 6 : index
    %218 = memref.load %arg0[%c6] : memref<8xi32, #tpu.memory_space<smem>>
    %219 = arith.index_cast %218 : i32 to index
    %c0_69 = arith.constant 0 : index
    %220 = vector.load %arg2[%219, %c0_69] : memref<50x512xf32, #tpu.memory_space<vmem>>, vector<1x512xf32>
    %c6_70 = arith.constant 6 : index
    %221 = memref.load %arg1[%c6_70] : memref<8xi32, #tpu.memory_space<smem>>
    %222 = arith.index_cast %221 : i32 to index
    %c0_71 = arith.constant 0 : index
    %223 = vector.load %arg3[%222, %c0_71] : memref<30x512xf32, #tpu.memory_space<vmem>>, vector<1x512xf32>
    %224 = arith.addf %220, %223 : vector<1x512xf32>
    %c0_72 = arith.constant 0 : index
    %c0_73 = arith.constant 0 : index
    %225 = vector.load %arg4[%c0_72, %c0_73] : memref<128x512xf32, #tpu.memory_space<vmem>>, vector<128x512xf32>
    %cst_74 = arith.constant dense<0.000000e+00> : vector<1x512xf32>
    %226 = tpu.matmul %216, %225, %cst_74 {dimension_numbers = #tpu.dot_dimension_numbers<[1], [0], [0], [1], [0, 0, 1, 1], [], []>} : vector<1x128xf32>, vector<128x512xf32>, vector<1x512xf32> -> vector<1x512xf32>
    %227 = arith.addf %224, %226 : vector<1x512xf32>
    %228 = vector.extract_strided_slice %227 {offsets = [0, 0], sizes = [1, 128], strides = [1, 1]} : vector<1x512xf32> to vector<1x128xf32>
    %229 = arith.negf %228 : vector<1x128xf32>
    %230 = math.exp %229 : vector<1x128xf32>
    %cst_75 = arith.constant 1.000000e+00 : f32
    %231 = vector.broadcast %cst_75 : f32 to vector<1x128xf32>
    %232 = arith.addf %231, %230 : vector<1x128xf32>
    %233 = arith.divf %231, %232 : vector<1x128xf32>
    %234 = vector.extract_strided_slice %227 {offsets = [0, 128], sizes = [1, 128], strides = [1, 1]} : vector<1x512xf32> to vector<1x128xf32>
    %235 = arith.negf %234 : vector<1x128xf32>
    %236 = math.exp %235 : vector<1x128xf32>
    %cst_76 = arith.constant 1.000000e+00 : f32
    %237 = vector.broadcast %cst_76 : f32 to vector<1x128xf32>
    %238 = arith.addf %237, %236 : vector<1x128xf32>
    %239 = arith.divf %237, %238 : vector<1x128xf32>
    %240 = vector.extract_strided_slice %227 {offsets = [0, 256], sizes = [1, 128], strides = [1, 1]} : vector<1x512xf32> to vector<1x128xf32>
    %241 = math.tanh %240 : vector<1x128xf32>
    %242 = vector.extract_strided_slice %227 {offsets = [0, 384], sizes = [1, 128], strides = [1, 1]} : vector<1x512xf32> to vector<1x128xf32>
    %243 = arith.negf %242 : vector<1x128xf32>
    %244 = math.exp %243 : vector<1x128xf32>
    %cst_77 = arith.constant 1.000000e+00 : f32
    %245 = vector.broadcast %cst_77 : f32 to vector<1x128xf32>
    %246 = arith.addf %245, %244 : vector<1x128xf32>
    %247 = arith.divf %245, %246 : vector<1x128xf32>
    %248 = arith.mulf %239, %214 : vector<1x128xf32>
    %249 = arith.mulf %233, %241 : vector<1x128xf32>
    %250 = arith.addf %248, %249 : vector<1x128xf32>
    %251 = math.tanh %250 : vector<1x128xf32>
    %252 = arith.mulf %247, %251 : vector<1x128xf32>
    %c6_78 = arith.constant 6 : index
    %c0_79 = arith.constant 0 : index
    %253 = vector.load %arg7[%c6_78, %c0_79] : memref<8x128xf32, #tpu.memory_space<vmem>>, vector<1x128xf32>
    tpu.vector_store %arg7[%c6_78, %c0_79], %252 {strides = array<i32>} : memref<8x128xf32, #tpu.memory_space<vmem>>, vector<1x128xf32>,
    %c7 = arith.constant 7 : index
    %254 = memref.load %arg0[%c7] : memref<8xi32, #tpu.memory_space<smem>>
    %255 = arith.index_cast %254 : i32 to index
    %c0_80 = arith.constant 0 : index
    %256 = vector.load %arg2[%255, %c0_80] : memref<50x512xf32, #tpu.memory_space<vmem>>, vector<1x512xf32>
    %c7_81 = arith.constant 7 : index
    %257 = memref.load %arg1[%c7_81] : memref<8xi32, #tpu.memory_space<smem>>
    %258 = arith.index_cast %257 : i32 to index
    %c0_82 = arith.constant 0 : index
    %259 = vector.load %arg3[%258, %c0_82] : memref<30x512xf32, #tpu.memory_space<vmem>>, vector<1x512xf32>
    %260 = arith.addf %256, %259 : vector<1x512xf32>
    %c0_83 = arith.constant 0 : index
    %c0_84 = arith.constant 0 : index
    %261 = vector.load %arg4[%c0_83, %c0_84] : memref<128x512xf32, #tpu.memory_space<vmem>>, vector<128x512xf32>
    %cst_85 = arith.constant dense<0.000000e+00> : vector<1x512xf32>
    %262 = tpu.matmul %252, %261, %cst_85 {dimension_numbers = #tpu.dot_dimension_numbers<[1], [0], [0], [1], [0, 0, 1, 1], [], []>} : vector<1x128xf32>, vector<128x512xf32>, vector<1x512xf32> -> vector<1x512xf32>
    %263 = arith.addf %260, %262 : vector<1x512xf32>
    %264 = vector.extract_strided_slice %263 {offsets = [0, 0], sizes = [1, 128], strides = [1, 1]} : vector<1x512xf32> to vector<1x128xf32>
    %265 = arith.negf %264 : vector<1x128xf32>
    %266 = math.exp %265 : vector<1x128xf32>
    %cst_86 = arith.constant 1.000000e+00 : f32
    %267 = vector.broadcast %cst_86 : f32 to vector<1x128xf32>
    %268 = arith.addf %267, %266 : vector<1x128xf32>
    %269 = arith.divf %267, %268 : vector<1x128xf32>
    %270 = vector.extract_strided_slice %263 {offsets = [0, 128], sizes = [1, 128], strides = [1, 1]} : vector<1x512xf32> to vector<1x128xf32>
    %271 = arith.negf %270 : vector<1x128xf32>
    %272 = math.exp %271 : vector<1x128xf32>
    %cst_87 = arith.constant 1.000000e+00 : f32
    %273 = vector.broadcast %cst_87 : f32 to vector<1x128xf32>
    %274 = arith.addf %273, %272 : vector<1x128xf32>
    %275 = arith.divf %273, %274 : vector<1x128xf32>
    %276 = vector.extract_strided_slice %263 {offsets = [0, 256], sizes = [1, 128], strides = [1, 1]} : vector<1x512xf32> to vector<1x128xf32>
    %277 = math.tanh %276 : vector<1x128xf32>
    %278 = vector.extract_strided_slice %263 {offsets = [0, 384], sizes = [1, 128], strides = [1, 1]} : vector<1x512xf32> to vector<1x128xf32>
    %279 = arith.negf %278 : vector<1x128xf32>
    %280 = math.exp %279 : vector<1x128xf32>
    %cst_88 = arith.constant 1.000000e+00 : f32
    %281 = vector.broadcast %cst_88 : f32 to vector<1x128xf32>
    %282 = arith.addf %281, %280 : vector<1x128xf32>
    %283 = arith.divf %281, %282 : vector<1x128xf32>
    %284 = arith.mulf %275, %250 : vector<1x128xf32>
    %285 = arith.mulf %269, %277 : vector<1x128xf32>
    %286 = arith.addf %284, %285 : vector<1x128xf32>
    %287 = math.tanh %286 : vector<1x128xf32>
    %288 = arith.mulf %283, %287 : vector<1x128xf32>
    %c7_89 = arith.constant 7 : index
    %c0_90 = arith.constant 0 : index
    %289 = vector.load %arg7[%c7_89, %c0_90] : memref<8x128xf32, #tpu.memory_space<vmem>>, vector<1x128xf32>
    tpu.vector_store %arg7[%c7_89, %c0_90], %288 {strides = array<i32>} : memref<8x128xf32, #tpu.memory_space<vmem>>, vector<1x128xf32>,
    %c0_91 = arith.constant 0 : index
    %c0_92 = arith.constant 0 : index
    %290 = vector.load %arg8[%c0_91, %c0_92] : memref<1x128xf32, #tpu.memory_space<vmem>>, vector<1x128xf32>
    tpu.vector_store %arg8[%c0_91, %c0_92], %288 {strides = array<i32>} : memref<1x128xf32, #tpu.memory_space<vmem>>, vector<1x128xf32>,
    %c0_93 = arith.constant 0 : index
    %c0_94 = arith.constant 0 : index
    %291 = vector.load %arg9[%c0_93, %c0_94] : memref<1x128xf32, #tpu.memory_space<vmem>>, vector<1x128xf32>
    tpu.vector_store %arg9[%c0_93, %c0_94], %286 {strides = array<i32>} : memref<1x128xf32, #tpu.memory_space<vmem>>, vector<1x128xf32>,
    return
  }
}

</mosaic_0001>

<llo_original>
// kernel: _forward_impl.1
$region0: #{_forward_impl.1}
  #allocation0 [shape = 'u32[]', space=smem, size = 0x4, offset = 0x4, fixed_abs, tag = 'smem constant byte address 0x4 - core index']
  #allocation1 [shape = 'u32[72,128]{1,0:T(1,128)}', space=vmem, size = 0x9000, scoped, tag = 'internal scratch']
  %s0 = inlined_call_operand.vmem [shape: s32[8], index: 0, kind: input, shape index: {}]
  %s1 = inlined_call_operand.vmem [shape: s32[8], index: 1, kind: input, shape index: {}]
  %s2 = inlined_call_operand.hbm [shape: f32[50,512], index: 2, kind: input, shape index: {}]
  %s3 = inlined_call_operand.hbm [shape: f32[30,512], index: 3, kind: input, shape index: {}]
  %s4 = inlined_call_operand.hbm [shape: f32[128,512], index: 4, kind: input, shape index: {}]
  %s5 = inlined_call_operand.vmem [shape: f32[1,128], index: 5, kind: input, shape index: {}]
  %s6 = inlined_call_operand.vmem [shape: f32[1,128], index: 6, kind: input, shape index: {}]
  %s7 = inlined_call_operand.hbm [shape: f32[8,128], index: 7, kind: output, shape index: {0}]
  %s8 = inlined_call_operand.vmem [shape: f32[1,128], index: 8, kind: output, shape index: {1}]
  %s9 = inlined_call_operand.vmem [shape: f32[1,128], index: 9, kind: output, shape index: {2}]
  %10 = xla_tuple %s7, %s8, %s9
  %s11 = sld [smem:[#allocation0]]
  $region74: #{_forward_impl.1} parent=0
    _
  %s13 = ssub.s32 1, %s11
  %s14 = scalar_select 0, %s13, %s11
  $region1: #{_forward_impl.1} parent=0
    #allocation2 [shape = 'u8[512]{0}', space=smem, size = 0x200, scoped, tag = 'input window, operand 0, single buffered']
    #allocation3 [shape = 's32[1]{0}', space=sflag, size = 0x4, scoped, tag = 'scoped memory for _forward_impl.1']
    #allocation4 [shape = 's32[1]{0}', space=sflag, size = 0x4, scoped, tag = 'scoped memory for _forward_impl.1']
    #allocation5 [shape = 's32[1]{0}', space=sflag, size = 0x4, scoped, tag = 'scoped memory for _forward_impl.1']
    #allocation6 [shape = 'u8[512]{0}', space=smem, size = 0x200, scoped, tag = 'input window, operand 1, single buffered']
    #allocation7 [shape = 's32[1]{0}', space=sflag, size = 0x4, scoped, tag = 'scoped memory for _forward_impl.1']
    #allocation8 [shape = 'u8[114688]{0}', space=vmem, size = 0x1c000, scoped, tag = 'input window, operand 2, single buffered']
    #allocation9 [shape = 'u8[65536]{0}', space=vmem, size = 0x10000, scoped, tag = 'input window, operand 3, single buffered']
    #allocation10 [shape = 's32[1]{0}', space=sflag, size = 0x4, scoped, tag = 'scoped memory for _forward_impl.1']
    #allocation11 [shape = 'u8[262144]{0}', space=vmem, size = 0x40000, scoped, tag = 'input window, operand 4, single buffered']
    #allocation12 [shape = 'u8[4096]{0}', space=vmem, size = 0x1000, scoped, tag = 'output window, operand 0, single buffered']
    %15 = vsyncpa [#allocation5], 0
    %16 = vsyncpa [#allocation7], 0
    %17 = vsyncpa [#allocation3], 0
    %18 = vsyncpa [#allocation10], 0
    %19 = vsyncpa [#allocation4], 0
    // Predicated region
    $region2: #{_forward_impl.1} parent=1 // pred_check
      _
    $region3: #{_forward_impl.1} parent=1 // pred_check_branch
      %21 = sbr.rel (0) target = $region5
    $region4: #{_forward_impl.1} parent=1 // pred_region
      %23 = vsyncadd [#allocation5], 0
      %s25 = sshll.u32 %s0, 4
      %s26 = int_to_ptr.vmem [resolvable:$true] %s25
      %28 = dma.vmem_to_smem %s26, 16, [#allocation2], [#allocation5]
    $region5: #{_forward_impl.1} parent=1 // pred_fallthru
      _
    // Predicated region
    $region6: #{_forward_impl.1} parent=1 // pred_check
      _
    $region7: #{_forward_impl.1} parent=1 // pred_check_branch
      %30 = sbr.rel (0) target = $region9
    $region8: #{_forward_impl.1} parent=1 // pred_region
      %32 = vsyncadd [#allocation7], 0
      %s34 = sshll.u32 %s1, 4
      %s35 = int_to_ptr.vmem [resolvable:$true] %s34
      %37 = dma.vmem_to_smem %s35, 16, [#allocation6], [#allocation7]
    $region9: #{_forward_impl.1} parent=1 // pred_fallthru
      _
    // Predicated region
    $region10: #{_forward_impl.1} parent=1 // pred_check
      _
    $region11: #{_forward_impl.1} parent=1 // pred_check_branch
      %39 = sbr.rel (0) target = $region13
    $region12: #{_forward_impl.1} parent=1 // pred_region
      %41 = vsyncadd [#allocation3], 0
      %s42 = sshll.u32 %s2, 4
      %s43 = int_to_ptr.hbm [resolvable:$true] %s42
      %s44 = sshll.u32 [#allocation8], 4
      %s45 = int_to_ptr.vmem [resolvable:$true] %s44
      %50 = dma.hbm_to_vmem [thread:$0]  %s43, 3584, %s45, [#allocation3], 512, 512, 32
    $region13: #{_forward_impl.1} parent=1 // pred_fallthru
      _
    // Predicated region
    $region14: #{_forward_impl.1} parent=1 // pred_check
      _
    $region15: #{_forward_impl.1} parent=1 // pred_check_branch
      %52 = sbr.rel (0) target = $region17
    $region16: #{_forward_impl.1} parent=1 // pred_region
      %54 = vsyncadd [#allocation10], 0
      %s55 = sshll.u32 %s3, 4
      %s56 = int_to_ptr.hbm [resolvable:$true] %s55
      %s57 = sshll.u32 [#allocation9], 4
      %s58 = int_to_ptr.vmem [resolvable:$true] %s57
      %63 = dma.hbm_to_vmem [thread:$0]  %s56, 2048, %s58, [#allocation10], 512, 512, 32
    $region17: #{_forward_impl.1} parent=1 // pred_fallthru
      _
    // Predicated region
    $region18: #{_forward_impl.1} parent=1 // pred_check
      _
    $region19: #{_forward_impl.1} parent=1 // pred_check_branch
      %65 = sbr.rel (0) target = $region21
    $region20: #{_forward_impl.1} parent=1 // pred_region
      %67 = vsyncadd [#allocation10], 0
      %s68 = sshll.u32 %s4, 4
      %s69 = int_to_ptr.hbm [resolvable:$true] %s68
      %s70 = sshll.u32 [#allocation11], 4
      %s71 = int_to_ptr.vmem [resolvable:$true] %s70
      %76 = dma.hbm_to_vmem [thread:$0]  %s69, 8192, %s71, [#allocation10], 512, 512, 32
    $region21: #{_forward_impl.1} parent=1 // pred_fallthru
      _
    // Predicated region
    $region22: #{_forward_impl.1} parent=1 // pred_check
      _
    $region23: #{_forward_impl.1} parent=1 // pred_check_branch
      %78 = sbr.rel (0) target = $region25
    $region24: #{_forward_impl.1} parent=1 // pred_region
      _
    $region25: #{_forward_impl.1} parent=1 // pred_fallthru
      _
    // Predicated region
    $region26: #{_forward_impl.1} parent=1 // pred_check
      _
    $region27: #{_forward_impl.1} parent=1 // pred_check_branch
      %80 = sbr.rel (0) target = $region29
    $region28: #{_forward_impl.1} parent=1 // pred_region
      _
    $region29: #{_forward_impl.1} parent=1 // pred_fallthru
      _
    // Predicated region
    $region30: #{_forward_impl.1} parent=1 // pred_check
      _
    $region31: #{_forward_impl.1} parent=1 // pred_check_branch
      %82 = sbr.rel (0) target = $region33
    $region32: #{_forward_impl.1} parent=1 // pred_region
      %84 = dma.done [#allocation5], 16
    $region33: #{_forward_impl.1} parent=1 // pred_fallthru
      _
    // Predicated region
    $region34: #{_forward_impl.1} parent=1 // pred_check
      _
    $region35: #{_forward_impl.1} parent=1 // pred_check_branch
      %86 = sbr.rel (0) target = $region37
    $region36: #{_forward_impl.1} parent=1 // pred_region
      %88 = dma.done [#allocation7], 16
    $region37: #{_forward_impl.1} parent=1 // pred_fallthru
      _
    // Predicated region
    $region38: #{_forward_impl.1} parent=1 // pred_check
      _
    $region39: #{_forward_impl.1} parent=1 // pred_check_branch
      %90 = sbr.rel (0) target = $region41
    $region40: #{_forward_impl.1} parent=1 // pred_region
      %92 = dma.done [#allocation3], 3584
    $region41: #{_forward_impl.1} parent=1 // pred_fallthru
      _
    // Predicated region
    $region42: #{_forward_impl.1} parent=1 // pred_check
      _
    $region43: #{_forward_impl.1} parent=1 // pred_check_branch
      %94 = sbr.rel (0) target = $region45
    $region44: #{_forward_impl.1} parent=1 // pred_region
      %96 = dma.done [#allocation10], 2048
    $region45: #{_forward_impl.1} parent=1 // pred_fallthru
      _
    // Predicated region
    $region46: #{_forward_impl.1} parent=1 // pred_check
      _
    $region47: #{_forward_impl.1} parent=1 // pred_check_branch
      %98 = sbr.rel (0) target = $region49
    $region48: #{_forward_impl.1} parent=1 // pred_region
      %100 = dma.done [#allocation10], 8192
    $region49: #{_forward_impl.1} parent=1 // pred_fallthru
      _
    %101 = sfence
    %v102 = vld [vmem:[%s5] sm:$0x1]
    %v103 = vld [vmem:[%s6] sm:$0x1]
    %s104 = sld [smem:[#allocation2]]
    %s105 = sshra.s32 %s104, 3
    %s106 = sand.u32 %s104, 7
    %s107 = sshra.s32 %s104, 3
    %s108 = sand.u32 %s104, 7
    %s109 = smul.u32 %s105, 4
    %s110 = smul.u32 %s109, 8
    %s111 = sadd.s32 %s110, %s108
    %s112 = scalar_lea.vmem [#allocation8], %s111
    %v113 = vld [vmem:[%s112] ss:$8 sm:$0xf]
    %s114 = sld [smem:[#allocation6]]
    %s115 = sshra.s32 %s114, 3
    %s116 = sand.u32 %s114, 7
    %s117 = sshra.s32 %s114, 3
    %s118 = sand.u32 %s114, 7
    %s119 = smul.u32 %s115, 4
    %s120 = smul.u32 %s119, 8
    %s121 = sadd.s32 %s120, %s118
    %s122 = scalar_lea.vmem [#allocation9], %s121
    %v123 = vld [vmem:[%s122] ss:$8 sm:$0xf]
    %v124 = vadd.f32 %v113, %v123
    %v125 = vld [vmem:[#allocation11] sm:$0xff]
    %v126 = vld [vmem:[#allocation11 + $0x8] sm:$0xff]
    %v127 = vld [vmem:[#allocation11 + $0x10] sm:$0xff]
    %v128 = vld [vmem:[#allocation11 + $0x18] sm:$0xff]
    %v129 = vld [vmem:[#allocation11 + $0x20] sm:$0xff]
    %v130 = vld [vmem:[#allocation11 + $0x28] sm:$0xff]
    %v131 = vld [vmem:[#allocation11 + $0x30] sm:$0xff]
    %v132 = vld [vmem:[#allocation11 + $0x38] sm:$0xff]
    %v133 = vld [vmem:[#allocation11 + $0x40] sm:$0xff]
    %v134 = vld [vmem:[#allocation11 + $0x48] sm:$0xff]
    %v135 = vld [vmem:[#allocation11 + $0x50] sm:$0xff]
    %v136 = vld [vmem:[#allocation11 + $0x58] sm:$0xff]
    %v137 = vld [vmem:[#allocation11 + $0x60] sm:$0xff]
    %v138 = vld [vmem:[#allocation11 + $0x68] sm:$0xff]
    %v139 = vld [vmem:[#allocation11 + $0x70] sm:$0xff]
    %v140 = vld [vmem:[#allocation11 + $0x78] sm:$0xff]
    %v141 = vld [vmem:[#allocation11 + $0x80] sm:$0xff]
    %v142 = vld [vmem:[#allocation11 + $0x88] sm:$0xff]
    %v143 = vld [vmem:[#allocation11 + $0x90] sm:$0xff]
    %v144 = vld [vmem:[#allocation11 + $0x98] sm:$0xff]
    %v145 = vld [vmem:[#allocation11 + $0xa0] sm:$0xff]
    %v146 = vld [vmem:[#allocation11 + $0xa8] sm:$0xff]
    %v147 = vld [vmem:[#allocation11 + $0xb0] sm:$0xff]
    %v148 = vld [vmem:[#allocation11 + $0xb8] sm:$0xff]
    %v149 = vld [vmem:[#allocation11 + $0xc0] sm:$0xff]
    %v150 = vld [vmem:[#allocation11 + $0xc8] sm:$0xff]
    %v151 = vld [vmem:[#allocation11 + $0xd0] sm:$0xff]
    %v152 = vld [vmem:[#allocation11 + $0xd8] sm:$0xff]
    %v153 = vld [vmem:[#allocation11 + $0xe0] sm:$0xff]
    %v154 = vld [vmem:[#allocation11 + $0xe8] sm:$0xff]
    %v155 = vld [vmem:[#allocation11 + $0xf0] sm:$0xff]
    %v156 = vld [vmem:[#allocation11 + $0xf8] sm:$0xff]
    %v157 = vld [vmem:[#allocation11 + $0x100] sm:$0xff]
    %v158 = vld [vmem:[#allocation11 + $0x108] sm:$0xff]
    %v159 = vld [vmem:[#allocation11 + $0x110] sm:$0xff]
    %v160 = vld [vmem:[#allocation11 + $0x118] sm:$0xff]
    %v161 = vld [vmem:[#allocation11 + $0x120] sm:$0xff]
    %v162 = vld [vmem:[#allocation11 + $0x128] sm:$0xff]
    %v163 = vld [vmem:[#allocation11 + $0x130] sm:$0xff]
    %v164 = vld [vmem:[#allocation11 + $0x138] sm:$0xff]
    %v165 = vld [vmem:[#allocation11 + $0x140] sm:$0xff]
    %v166 = vld [vmem:[#allocation11 + $0x148] sm:$0xff]
    %v167 = vld [vmem:[#allocation11 + $0x150] sm:$0xff]
    %v168 = vld [vmem:[#allocation11 + $0x158] sm:$0xff]
    %v169 = vld [vmem:[#allocation11 + $0x160] sm:$0xff]
    %v170 = vld [vmem:[#allocation11 + $0x168] sm:$0xff]
    %v171 = vld [vmem:[#allocation11 + $0x170] sm:$0xff]
    %v172 = vld [vmem:[#allocation11 + $0x178] sm:$0xff]
    %v173 = vld [vmem:[#allocation11 + $0x180] sm:$0xff]
    %v174 = vld [vmem:[#allocation11 + $0x188] sm:$0xff]
    %v175 = vld [vmem:[#allocation11 + $0x190] sm:$0xff]
    %v176 = vld [vmem:[#allocation11 + $0x198] sm:$0xff]
    %v177 = vld [vmem:[#allocation11 + $0x1a0] sm:$0xff]
    %v178 = vld [vmem:[#allocation11 + $0x1a8] sm:$0xff]
    %v179 = vld [vmem:[#allocation11 + $0x1b0] sm:$0xff]
    %v180 = vld [vmem:[#allocation11 + $0x1b8] sm:$0xff]
    %v181 = vld [vmem:[#allocation11 + $0x1c0] sm:$0xff]
    %v182 = vld [vmem:[#allocation11 + $0x1c8] sm:$0xff]
    %v183 = vld [vmem:[#allocation11 + $0x1d0] sm:$0xff]
    %v184 = vld [vmem:[#allocation11 + $0x1d8] sm:$0xff]
    %v185 = vld [vmem:[#allocation11 + $0x1e0] sm:$0xff]
    %v186 = vld [vmem:[#allocation11 + $0x1e8] sm:$0xff]
    %v187 = vld [vmem:[#allocation11 + $0x1f0] sm:$0xff]
    %v188 = vld [vmem:[#allocation11 + $0x1f8] sm:$0xff]
    %189 = vmatpush.msra.mxu0 %v185
    %190 = vmatpush.msra.mxu0 %v181
    %191 = vmatpush.msra.mxu0 %v177
    %192 = vmatpush.msra.mxu0 %v173
    %193 = vmatpush.msra.mxu0 %v169
    %194 = vmatpush.msra.mxu0 %v165
    %195 = vmatpush.msra.mxu0 %v161
    %196 = vmatpush.msra.mxu0 %v157
    %197 = vmatpush.msra.mxu0 %v153
    %198 = vmatpush.msra.mxu0 %v149
    %199 = vmatpush.msra.mxu0 %v145
    %200 = vmatpush.msra.mxu0 %v141
    %201 = vmatpush.msra.mxu0 %v137
    %202 = vmatpush.msra.mxu0 %v133
    %203 = vmatpush.msra.mxu0 %v129
    %204 = vmatpush.msra.mxu0 %v125
    %205 = vmatmul.f32.gmra.mxu0 %v102
    %v206 = vpop.f32.mrf.mxu0
    %v207 = vadd.f32 0.0, %v206
    %208 = vdwg.mxu0
    %209 = vmatpush.msra.mxu0 %v186
    %210 = vmatpush.msra.mxu0 %v182
    %211 = vmatpush.msra.mxu0 %v178
    %212 = vmatpush.msra.mxu0 %v174
    %213 = vmatpush.msra.mxu0 %v170
    %214 = vmatpush.msra.mxu0 %v166
    %215 = vmatpush.msra.mxu0 %v162
    %216 = vmatpush.msra.mxu0 %v158
    %217 = vmatpush.msra.mxu0 %v154
    %218 = vmatpush.msra.mxu0 %v150
    %219 = vmatpush.msra.mxu0 %v146
    %220 = vmatpush.msra.mxu0 %v142
    %221 = vmatpush.msra.mxu0 %v138
    %222 = vmatpush.msra.mxu0 %v134
    %223 = vmatpush.msra.mxu0 %v130
    %224 = vmatpush.msra.mxu0 %v126
    %225 = vmatmul.f32.gmra.mxu0 %v102
    %v226 = vpop.f32.mrf.mxu0
    %v227 = vadd.f32 0.0, %v226
    %228 = vdwg.mxu0
    %229 = vmatpush.msra.mxu0 %v187
    %230 = vmatpush.msra.mxu0 %v183
    %231 = vmatpush.msra.mxu0 %v179
    %232 = vmatpush.msra.mxu0 %v175
    %233 = vmatpush.msra.mxu0 %v171
    %234 = vmatpush.msra.mxu0 %v167
    %235 = vmatpush.msra.mxu0 %v163
    %236 = vmatpush.msra.mxu0 %v159
    %237 = vmatpush.msra.mxu0 %v155
    %238 = vmatpush.msra.mxu0 %v151
    %239 = vmatpush.msra.mxu0 %v147
    %240 = vmatpush.msra.mxu0 %v143
    %241 = vmatpush.msra.mxu0 %v139
    %242 = vmatpush.msra.mxu0 %v135
    %243 = vmatpush.msra.mxu0 %v131
    %244 = vmatpush.msra.mxu0 %v127
    %245 = vmatmul.f32.gmra.mxu0 %v102
    %v246 = vpop.f32.mrf.mxu0
    %v247 = vadd.f32 0.0, %v246
    %248 = vdwg.mxu0
    %249 = vmatpush.msra.mxu0 %v188
    %250 = vmatpush.msra.mxu0 %v184
    %251 = vmatpush.msra.mxu0 %v180
    %252 = vmatpush.msra.mxu0 %v176
    %253 = vmatpush.msra.mxu0 %v172
    %254 = vmatpush.msra.mxu0 %v168
    %255 = vmatpush.msra.mxu0 %v164
    %256 = vmatpush.msra.mxu0 %v160
    %257 = vmatpush.msra.mxu0 %v156
    %258 = vmatpush.msra.mxu0 %v152
    %259 = vmatpush.msra.mxu0 %v148
    %260 = vmatpush.msra.mxu0 %v144
    %261 = vmatpush.msra.mxu0 %v140
    %262 = vmatpush.msra.mxu0 %v136
    %263 = vmatpush.msra.mxu0 %v132
    %264 = vmatpush.msra.mxu0 %v128
    %265 = vmatmul.f32.gmra.mxu0 %v102
    %v266 = vpop.f32.mrf.mxu0
    %v267 = vadd.f32 0.0, %v266
    %268 = vdwg.mxu0
    %v273 = vrot.slane %v227, 7
    %v274 = vrot.slane %v247, 6
    %v275 = vrot.slane %v267, 5
    %vm276 = vcmask 1040384
    %v277 = vsel %vm276, %v207, %v273
    %vm278 = vcmask 1042434
    %v279 = vsel %vm278, %v274, %v275
    %vm280 = vcmask 1041408
    %v281 = vsel %vm280, %v277, %v279
    %v283 = vadd.f32 %v124, %v281
    %v284 = vxor.u32 %v283, 2147483648
    %v285 = vmul.f32 %v284, 1.442695
    %v286 = vpow.pop %v285
    %v287 = vadd.f32 %v286, 1.0
    %v288 = vrcp.pop %v287
    %v289 = vmul.f32 %v287, %v288
    %v290 = vsub.f32 1.0, %v289
    %v291 = vmul.f32 %v288, %v290
    %v292 = vadd.f32 %v288, %v291
    %vm293 = vweird.f32 %v287
    %vm294 = vweird.f32 %v288
    %vm295 = vmor %vm293, %vm294
    %v296 = vsel %vm295, %v288, %v292
    %v297 = vand.u32 2147483647, %v287
    %vm298 = vcmp.eq.f32.partialorder %v297, 8.507059e+37
    %v299 = vand.u32 %v287, 2147483648
    %v300 = vor.u32 1.1754944e-38, %v299
    %v301 = vsel %vm298, %v300, %v296
    %v302 = vmul.f32 1.0, %v301
    %v304 = vrot.slane %v283, 1
    %v306 = vxor.u32 %v304, 2147483648
    %v307 = vmul.f32 %v306, 1.442695
    %v308 = vpow.pop %v307
    %v309 = vadd.f32 %v308, 1.0
    %v310 = vrcp.pop %v309
    %v311 = vmul.f32 %v309, %v310
    %v312 = vsub.f32 1.0, %v311
    %v313 = vmul.f32 %v310, %v312
    %v314 = vadd.f32 %v310, %v313
    %vm315 = vweird.f32 %v309
    %vm316 = vweird.f32 %v310
    %vm317 = vmor %vm315, %vm316
    %v318 = vsel %vm317, %v310, %v314
    %v319 = vand.u32 2147483647, %v309
    %vm320 = vcmp.eq.f32.partialorder %v319, 8.507059e+37
    %v321 = vand.u32 %v309, 2147483648
    %v322 = vor.u32 1.1754944e-38, %v321
    %v323 = vsel %vm320, %v322, %v318
    %v324 = vmul.f32 1.0, %v323
    %v325 = vrot.slane %v283, 2
    %v327 = vtanh.pop %v325
    %v328 = vrot.slane %v283, 3
    %v330 = vxor.u32 %v328, 2147483648
    %v331 = vmul.f32 %v330, 1.442695
    %v332 = vpow.pop %v331
    %v333 = vadd.f32 %v332, 1.0
    %v334 = vrcp.pop %v333
    %v335 = vmul.f32 %v333, %v334
    %v336 = vsub.f32 1.0, %v335
    %v337 = vmul.f32 %v334, %v336
    %v338 = vadd.f32 %v334, %v337
    %vm339 = vweird.f32 %v333
    %vm340 = vweird.f32 %v334
    %vm341 = vmor %vm339, %vm340
    %v342 = vsel %vm341, %v334, %v338
    %v343 = vand.u32 2147483647, %v333
    %vm344 = vcmp.eq.f32.partialorder %v343, 8.507059e+37
    %v345 = vand.u32 %v333, 2147483648
    %v346 = vor.u32 1.1754944e-38, %v345
    %v347 = vsel %vm344, %v346, %v342
    %v348 = vmul.f32 1.0, %v347
    %v349 = vmul.f32 %v324, %v103
    %v350 = vmul.f32 %v302, %v327
    %v351 = vadd.f32 %v349, %v350
    %v352 = vtanh.pop %v351
    %v353 = vmul.f32 %v348, %v352
    %354 = vst [vmem:[#allocation12] sm:$0x1] %v353
    %s355 = sld [smem:[#allocation2 + $0x1]]
    %s356 = sshra.s32 %s355, 3
    %s357 = sand.u32 %s355, 7
    %s358 = sshra.s32 %s355, 3
    %s359 = sand.u32 %s355, 7
    %s360 = smul.u32 %s356, 4
    %s361 = smul.u32 %s360, 8
    %s362 = sadd.s32 %s361, %s359
    %s363 = scalar_lea.vmem [#allocation8], %s362
    %v364 = vld [vmem:[%s363] ss:$8 sm:$0xf]
    %s365 = sld [smem:[#allocation6 + $0x1]]
    %s366 = sshra.s32 %s365, 3
    %s367 = sand.u32 %s365, 7
    %s368 = sshra.s32 %s365, 3
    %s369 = sand.u32 %s365, 7
    %s370 = smul.u32 %s366, 4
    %s371 = smul.u32 %s370, 8
    %s372 = sadd.s32 %s371, %s369
    %s373 = scalar_lea.vmem [#allocation9], %s372
    %v374 = vld [vmem:[%s373] ss:$8 sm:$0xf]
    %v375 = vadd.f32 %v364, %v374
    %v376 = vld [vmem:[#allocation11] sm:$0xff]
    %v377 = vld [vmem:[#allocation11 + $0x8] sm:$0xff]
    %v378 = vld [vmem:[#allocation11 + $0x10] sm:$0xff]
    %v379 = vld [vmem:[#allocation11 + $0x18] sm:$0xff]
    %v380 = vld [vmem:[#allocation11 + $0x20] sm:$0xff]
    %v381 = vld [vmem:[#allocation11 + $0x28] sm:$0xff]
    %v382 = vld [vmem:[#allocation11 + $0x30] sm:$0xff]
    %v383 = vld [vmem:[#allocation11 + $0x38] sm:$0xff]
    %v384 = vld [vmem:[#allocation11 + $0x40] sm:$0xff]
    %v385 = vld [vmem:[#allocation11 + $0x48] sm:$0xff]
    %v386 = vld [vmem:[#allocation11 + $0x50] sm:$0xff]
    %v387 = vld [vmem:[#allocation11 + $0x58] sm:$0xff]
    %v388 = vld [vmem:[#allocation11 + $0x60] sm:$0xff]
    %v389 = vld [vmem:[#allocation11 + $0x68] sm:$0xff]
    %v390 = vld [vmem:[#allocation11 + $0x70] sm:$0xff]
    %v391 = vld [vmem:[#allocation11 + $0x78] sm:$0xff]
    %v392 = vld [vmem:[#allocation11 + $0x80] sm:$0xff]
    %v393 = vld [vmem:[#allocation11 + $0x88] sm:$0xff]
    %v394 = vld [vmem:[#allocation11 + $0x90] sm:$0xff]
    %v395 = vld [vmem:[#allocation11 + $0x98] sm:$0xff]
    %v396 = vld [vmem:[#allocation11 + $0xa0] sm:$0xff]
    %v397 = vld [vmem:[#allocation11 + $0xa8] sm:$0xff]
    %v398 = vld [vmem:[#allocation11 + $0xb0] sm:$0xff]
    %v399 = vld [vmem:[#allocation11 + $0xb8] sm:$0xff]
    %v400 = vld [vmem:[#allocation11 + $0xc0] sm:$0xff]
    %v401 = vld [vmem:[#allocation11 + $0xc8] sm:$0xff]
    %v402 = vld [vmem:[#allocation11 + $0xd0] sm:$0xff]
    %v403 = vld [vmem:[#allocation11 + $0xd8] sm:$0xff]
    %v404 = vld [vmem:[#allocation11 + $0xe0] sm:$0xff]
    %v405 = vld [vmem:[#allocation11 + $0xe8] sm:$0xff]
    %v406 = vld [vmem:[#allocation11 + $0xf0] sm:$0xff]
    %v407 = vld [vmem:[#allocation11 + $0xf8] sm:$0xff]
    %v408 = vld [vmem:[#allocation11 + $0x100] sm:$0xff]
    %v409 = vld [vmem:[#allocation11 + $0x108] sm:$0xff]
    %v410 = vld [vmem:[#allocation11 + $0x110] sm:$0xff]
    %v411 = vld [vmem:[#allocation11 + $0x118] sm:$0xff]
    %v412 = vld [vmem:[#allocation11 + $0x120] sm:$0xff]
    %v413 = vld [vmem:[#allocation11 + $0x128] sm:$0xff]
    %v414 = vld [vmem:[#allocation11 + $0x130] sm:$0xff]
    %v415 = vld [vmem:[#allocation11 + $0x138] sm:$0xff]
    %v416 = vld [vmem:[#allocation11 + $0x140] sm:$0xff]
    %v417 = vld [vmem:[#allocation11 + $0x148] sm:$0xff]
    %v418 = vld [vmem:[#allocation11 + $0x150] sm:$0xff]
    %v419 = vld [vmem:[#allocation11 + $0x158] sm:$0xff]
    %v420 = vld [vmem:[#allocation11 + $0x160] sm:$0xff]
    %v421 = vld [vmem:[#allocation11 + $0x168] sm:$0xff]
    %v422 = vld [vmem:[#allocation11 + $0x170] sm:$0xff]
    %v423 = vld [vmem:[#allocation11 + $0x178] sm:$0xff]
    %v424 = vld [vmem:[#allocation11 + $0x180] sm:$0xff]
    %v425 = vld [vmem:[#allocation11 + $0x188] sm:$0xff]
    %v426 = vld [vmem:[#allocation11 + $0x190] sm:$0xff]
    %v427 = vld [vmem:[#allocation11 + $0x198] sm:$0xff]
    %v428 = vld [vmem:[#allocation11 + $0x1a0] sm:$0xff]
    %v429 = vld [vmem:[#allocation11 + $0x1a8] sm:$0xff]
    %v430 = vld [vmem:[#allocation11 + $0x1b0] sm:$0xff]
    %v431 = vld [vmem:[#allocation11 + $0x1b8] sm:$0xff]
    %v432 = vld [vmem:[#allocation11 + $0x1c0] sm:$0xff]
    %v433 = vld [vmem:[#allocation11 + $0x1c8] sm:$0xff]
    %v434 = vld [vmem:[#allocation11 + $0x1d0] sm:$0xff]
    %v435 = vld [vmem:[#allocation11 + $0x1d8] sm:$0xff]
    %v436 = vld [vmem:[#allocation11 + $0x1e0] sm:$0xff]
    %v437 = vld [vmem:[#allocation11 + $0x1e8] sm:$0xff]
    %v438 = vld [vmem:[#allocation11 + $0x1f0] sm:$0xff]
    %v439 = vld [vmem:[#allocation11 + $0x1f8] sm:$0xff]
    %440 = vmatpush.msra.mxu0 %v436
    %441 = vmatpush.msra.mxu0 %v432
    %442 = vmatpush.msra.mxu0 %v428
    %443 = vmatpush.msra.mxu0 %v424
    %444 = vmatpush.msra.mxu0 %v420
    %445 = vmatpush.msra.mxu0 %v416
    %446 = vmatpush.msra.mxu0 %v412
    %447 = vmatpush.msra.mxu0 %v408
    %448 = vmatpush.msra.mxu0 %v404
    %449 = vmatpush.msra.mxu0 %v400
    %450 = vmatpush.msra.mxu0 %v396
    %451 = vmatpush.msra.mxu0 %v392
    %452 = vmatpush.msra.mxu0 %v388
    %453 = vmatpush.msra.mxu0 %v384
    %454 = vmatpush.msra.mxu0 %v380
    %455 = vmatpush.msra.mxu0 %v376
    %456 = vmatmul.f32.gmra.mxu0 %v353
    %v457 = vpop.f32.mrf.mxu0
    %v458 = vadd.f32 0.0, %v457
    %459 = vdwg.mxu0
    %460 = vmatpush.msra.mxu0 %v437
    %461 = vmatpush.msra.mxu0 %v433
    %462 = vmatpush.msra.mxu0 %v429
    %463 = vmatpush.msra.mxu0 %v425
    %464 = vmatpush.msra.mxu0 %v421
    %465 = vmatpush.msra.mxu0 %v417
    %466 = vmatpush.msra.mxu0 %v413
    %467 = vmatpush.msra.mxu0 %v409
    %468 = vmatpush.msra.mxu0 %v405
    %469 = vmatpush.msra.mxu0 %v401
    %470 = vmatpush.msra.mxu0 %v397
    %471 = vmatpush.msra.mxu0 %v393
    %472 = vmatpush.msra.mxu0 %v389
    %473 = vmatpush.msra.mxu0 %v385
    %474 = vmatpush.msra.mxu0 %v381
    %475 = vmatpush.msra.mxu0 %v377
    %476 = vmatmul.f32.gmra.mxu0 %v353
    %v477 = vpop.f32.mrf.mxu0
    %v478 = vadd.f32 0.0, %v477
    %479 = vdwg.mxu0
    %480 = vmatpush.msra.mxu0 %v438
    %481 = vmatpush.msra.mxu0 %v434
    %482 = vmatpush.msra.mxu0 %v430
    %483 = vmatpush.msra.mxu0 %v426
    %484 = vmatpush.msra.mxu0 %v422
    %485 = vmatpush.msra.mxu0 %v418
    %486 = vmatpush.msra.mxu0 %v414
    %487 = vmatpush.msra.mxu0 %v410
    %488 = vmatpush.msra.mxu0 %v406
    %489 = vmatpush.msra.mxu0 %v402
    %490 = vmatpush.msra.mxu0 %v398
    %491 = vmatpush.msra.mxu0 %v394
    %492 = vmatpush.msra.mxu0 %v390
    %493 = vmatpush.msra.mxu0 %v386
    %494 = vmatpush.msra.mxu0 %v382
    %495 = vmatpush.msra.mxu0 %v378
    %496 = vmatmul.f32.gmra.mxu0 %v353
    %v497 = vpop.f32.mrf.mxu0
    %v498 = vadd.f32 0.0, %v497
    %499 = vdwg.mxu0
    %500 = vmatpush.msra.mxu0 %v439
    %501 = vmatpush.msra.mxu0 %v435
    %502 = vmatpush.msra.mxu0 %v431
    %503 = vmatpush.msra.mxu0 %v427
    %504 = vmatpush.msra.mxu0 %v423
    %505 = vmatpush.msra.mxu0 %v419
    %506 = vmatpush.msra.mxu0 %v415
    %507 = vmatpush.msra.mxu0 %v411
    %508 = vmatpush.msra.mxu0 %v407
    %509 = vmatpush.msra.mxu0 %v403
    %510 = vmatpush.msra.mxu0 %v399
    %511 = vmatpush.msra.mxu0 %v395
    %512 = vmatpush.msra.mxu0 %v391
    %513 = vmatpush.msra.mxu0 %v387
    %514 = vmatpush.msra.mxu0 %v383
    %515 = vmatpush.msra.mxu0 %v379
    %516 = vmatmul.f32.gmra.mxu0 %v353
    %v517 = vpop.f32.mrf.mxu0
    %v518 = vadd.f32 0.0, %v517
    %519 = vdwg.mxu0
    %v524 = vrot.slane %v478, 7
    %v525 = vrot.slane %v498, 6
    %v526 = vrot.slane %v518, 5
    %v527 = vsel %vm276, %v458, %v524
    %v528 = vsel %vm278, %v525, %v526
    %v529 = vsel %vm280, %v527, %v528
    %v531 = vadd.f32 %v375, %v529
    %v532 = vxor.u32 %v531, 2147483648
    %v533 = vmul.f32 %v532, 1.442695
    %v534 = vpow.pop %v533
    %v535 = vadd.f32 %v534, 1.0
    %v536 = vrcp.pop %v535
    %v537 = vmul.f32 %v535, %v536
    %v538 = vsub.f32 1.0, %v537
    %v539 = vmul.f32 %v536, %v538
    %v540 = vadd.f32 %v536, %v539
    %vm541 = vweird.f32 %v535
    %vm542 = vweird.f32 %v536
    %vm543 = vmor %vm541, %vm542
    %v544 = vsel %vm543, %v536, %v540
    %v545 = vand.u32 2147483647, %v535
    %vm546 = vcmp.eq.f32.partialorder %v545, 8.507059e+37
    %v547 = vand.u32 %v535, 2147483648
    %v548 = vor.u32 1.1754944e-38, %v547
    %v549 = vsel %vm546, %v548, %v544
    %v550 = vmul.f32 1.0, %v549
    %v552 = vrot.slane %v531, 1
    %v554 = vxor.u32 %v552, 2147483648
    %v555 = vmul.f32 %v554, 1.442695
    %v556 = vpow.pop %v555
    %v557 = vadd.f32 %v556, 1.0
    %v558 = vrcp.pop %v557
    %v559 = vmul.f32 %v557, %v558
    %v560 = vsub.f32 1.0, %v559
    %v561 = vmul.f32 %v558, %v560
    %v562 = vadd.f32 %v558, %v561
    %vm563 = vweird.f32 %v557
    %vm564 = vweird.f32 %v558
    %vm565 = vmor %vm563, %vm564
    %v566 = vsel %vm565, %v558, %v562
    %v567 = vand.u32 2147483647, %v557
    %vm568 = vcmp.eq.f32.partialorder %v567, 8.507059e+37
    %v569 = vand.u32 %v557, 2147483648
    %v570 = vor.u32 1.1754944e-38, %v569
    %v571 = vsel %vm568, %v570, %v566
    %v572 = vmul.f32 1.0, %v571
    %v573 = vrot.slane %v531, 2
    %v575 = vtanh.pop %v573
    %v576 = vrot.slane %v531, 3
    %v578 = vxor.u32 %v576, 2147483648
    %v579 = vmul.f32 %v578, 1.442695
    %v580 = vpow.pop %v579
    %v581 = vadd.f32 %v580, 1.0
    %v582 = vrcp.pop %v581
    %v583 = vmul.f32 %v581, %v582
    %v584 = vsub.f32 1.0, %v583
    %v585 = vmul.f32 %v582, %v584
    %v586 = vadd.f32 %v582, %v585
    %vm587 = vweird.f32 %v581
    %vm588 = vweird.f32 %v582
    %vm589 = vmor %vm587, %vm588
    %v590 = vsel %vm589, %v582, %v586
    %v591 = vand.u32 2147483647, %v581
    %vm592 = vcmp.eq.f32.partialorder %v591, 8.507059e+37
    %v593 = vand.u32 %v581, 2147483648
    %v594 = vor.u32 1.1754944e-38, %v593
    %v595 = vsel %vm592, %v594, %v590
    %v596 = vmul.f32 1.0, %v595
    %v597 = vmul.f32 %v572, %v351
    %v598 = vmul.f32 %v550, %v575
    %v599 = vadd.f32 %v597, %v598
    %v600 = vtanh.pop %v599
    %v601 = vmul.f32 %v596, %v600
    %602 = vst [vmem:[#allocation12 + $0x1] sm:$0x1] %v601
    %s603 = sld [smem:[#allocation2 + $0x2]]
    %s604 = sshra.s32 %s603, 3
    %s605 = sand.u32 %s603, 7
    %s606 = sshra.s32 %s603, 3
    %s607 = sand.u32 %s603, 7
    %s608 = smul.u32 %s604, 4
    %s609 = smul.u32 %s608, 8
    %s610 = sadd.s32 %s609, %s607
    %s611 = scalar_lea.vmem [#allocation8], %s610
    %v612 = vld [vmem:[%s611] ss:$8 sm:$0xf]
    %s613 = sld [smem:[#allocation6 + $0x2]]
    %s614 = sshra.s32 %s613, 3
    %s615 = sand.u32 %s613, 7
    %s616 = sshra.s32 %s613, 3
    %s617 = sand.u32 %s613, 7
    %s618 = smul.u32 %s614, 4
    %s619 = smul.u32 %s618, 8
    %s620 = sadd.s32 %s619, %s617
    %s621 = scalar_lea.vmem [#allocation9], %s620
    %v622 = vld [vmem:[%s621] ss:$8 sm:$0xf]
    %v623 = vadd.f32 %v612, %v622
    %v624 = vld [vmem:[#allocation11] sm:$0xff]
    %v625 = vld [vmem:[#allocation11 + $0x8] sm:$0xff]
    %v626 = vld [vmem:[#allocation11 + $0x10] sm:$0xff]
    %v627 = vld [vmem:[#allocation11 + $0x18] sm:$0xff]
    %v628 = vld [vmem:[#allocation11 + $0x20] sm:$0xff]
    %v629 = vld [vmem:[#allocation11 + $0x28] sm:$0xff]
    %v630 = vld [vmem:[#allocation11 + $0x30] sm:$0xff]
    %v631 = vld [vmem:[#allocation11 + $0x38] sm:$0xff]
    %v632 = vld [vmem:[#allocation11 + $0x40] sm:$0xff]
    %v633 = vld [vmem:[#allocation11 + $0x48] sm:$0xff]
    %v634 = vld [vmem:[#allocation11 + $0x50] sm:$0xff]
    %v635 = vld [vmem:[#allocation11 + $0x58] sm:$0xff]
    %v636 = vld [vmem:[#allocation11 + $0x60] sm:$0xff]
    %v637 = vld [vmem:[#allocation11 + $0x68] sm:$0xff]
    %v638 = vld [vmem:[#allocation11 + $0x70] sm:$0xff]
    %v639 = vld [vmem:[#allocation11 + $0x78] sm:$0xff]
    %v640 = vld [vmem:[#allocation11 + $0x80] sm:$0xff]
    %v641 = vld [vmem:[#allocation11 + $0x88] sm:$0xff]
    %v642 = vld [vmem:[#allocation11 + $0x90] sm:$0xff]
    %v643 = vld [vmem:[#allocation11 + $0x98] sm:$0xff]
    %v644 = vld [vmem:[#allocation11 + $0xa0] sm:$0xff]
    %v645 = vld [vmem:[#allocation11 + $0xa8] sm:$0xff]
    %v646 = vld [vmem:[#allocation11 + $0xb0] sm:$0xff]
    %v647 = vld [vmem:[#allocation11 + $0xb8] sm:$0xff]
    %v648 = vld [vmem:[#allocation11 + $0xc0] sm:$0xff]
    %v649 = vld [vmem:[#allocation11 + $0xc8] sm:$0xff]
    %v650 = vld [vmem:[#allocation11 + $0xd0] sm:$0xff]
    %v651 = vld [vmem:[#allocation11 + $0xd8] sm:$0xff]
    %v652 = vld [vmem:[#allocation11 + $0xe0] sm:$0xff]
    %v653 = vld [vmem:[#allocation11 + $0xe8] sm:$0xff]
    %v654 = vld [vmem:[#allocation11 + $0xf0] sm:$0xff]
    %v655 = vld [vmem:[#allocation11 + $0xf8] sm:$0xff]
    %v656 = vld [vmem:[#allocation11 + $0x100] sm:$0xff]
    %v657 = vld [vmem:[#allocation11 + $0x108] sm:$0xff]
    %v658 = vld [vmem:[#allocation11 + $0x110] sm:$0xff]
    %v659 = vld [vmem:[#allocation11 + $0x118] sm:$0xff]
    %v660 = vld [vmem:[#allocation11 + $0x120] sm:$0xff]
    %v661 = vld [vmem:[#allocation11 + $0x128] sm:$0xff]
    %v662 = vld [vmem:[#allocation11 + $0x130] sm:$0xff]
    %v663 = vld [vmem:[#allocation11 + $0x138] sm:$0xff]
    %v664 = vld [vmem:[#allocation11 + $0x140] sm:$0xff]
    %v665 = vld [vmem:[#allocation11 + $0x148] sm:$0xff]
    %v666 = vld [vmem:[#allocation11 + $0x150] sm:$0xff]
    %v667 = vld [vmem:[#allocation11 + $0x158] sm:$0xff]
    %v668 = vld [vmem:[#allocation11 + $0x160] sm:$0xff]
    %v669 = vld [vmem:[#allocation11 + $0x168] sm:$0xff]
    %v670 = vld [vmem:[#allocation11 + $0x170] sm:$0xff]
    %v671 = vld [vmem:[#allocation11 + $0x178] sm:$0xff]
    %v672 = vld [vmem:[#allocation11 + $0x180] sm:$0xff]
    %v673 = vld [vmem:[#allocation11 + $0x188] sm:$0xff]
    %v674 = vld [vmem:[#allocation11 + $0x190] sm:$0xff]
    %v675 = vld [vmem:[#allocation11 + $0x198] sm:$0xff]
    %v676 = vld [vmem:[#allocation11 + $0x1a0] sm:$0xff]
    %v677 = vld [vmem:[#allocation11 + $0x1a8] sm:$0xff]
    %v678 = vld [vmem:[#allocation11 + $0x1b0] sm:$0xff]
    %v679 = vld [vmem:[#allocation11 + $0x1b8] sm:$0xff]
    %v680 = vld [vmem:[#allocation11 + $0x1c0] sm:$0xff]
    %v681 = vld [vmem:[#allocation11 + $0x1c8] sm:$0xff]
    %v682 = vld [vmem:[#allocation11 + $0x1d0] sm:$0xff]
    %v683 = vld [vmem:[#allocation11 + $0x1d8] sm:$0xff]
    %v684 = vld [vmem:[#allocation11 + $0x1e0] sm:$0xff]
    %v685 = vld [vmem:[#allocation11 + $0x1e8] sm:$0xff]
    %v686 = vld [vmem:[#allocation11 + $0x1f0] sm:$0xff]
    %v687 = vld [vmem:[#allocation11 + $0x1f8] sm:$0xff]
    %688 = vmatpush.msra.mxu0 %v684
    %689 = vmatpush.msra.mxu0 %v680
    %690 = vmatpush.msra.mxu0 %v676
    %691 = vmatpush.msra.mxu0 %v672
    %692 = vmatpush.msra.mxu0 %v668
    %693 = vmatpush.msra.mxu0 %v664
    %694 = vmatpush.msra.mxu0 %v660
    %695 = vmatpush.msra.mxu0 %v656
    %696 = vmatpush.msra.mxu0 %v652
    %697 = vmatpush.msra.mxu0 %v648
    %698 = vmatpush.msra.mxu0 %v644
    %699 = vmatpush.msra.mxu0 %v640
    %700 = vmatpush.msra.mxu0 %v636
    %701 = vmatpush.msra.mxu0 %v632
    %702 = vmatpush.msra.mxu0 %v628
    %703 = vmatpush.msra.mxu0 %v624
    %704 = vmatmul.f32.gmra.mxu0 %v601
    %v705 = vpop.f32.mrf.mxu0
    %v706 = vadd.f32 0.0, %v705
    %707 = vdwg.mxu0
    %708 = vmatpush.msra.mxu0 %v685
    %709 = vmatpush.msra.mxu0 %v681
    %710 = vmatpush.msra.mxu0 %v677
    %711 = vmatpush.msra.mxu0 %v673
    %712 = vmatpush.msra.mxu0 %v669
    %713 = vmatpush.msra.mxu0 %v665
    %714 = vmatpush.msra.mxu0 %v661
    %715 = vmatpush.msra.mxu0 %v657
    %716 = vmatpush.msra.mxu0 %v653
    %717 = vmatpush.msra.mxu0 %v649
    %718 = vmatpush.msra.mxu0 %v645
    %719 = vmatpush.msra.mxu0 %v641
    %720 = vmatpush.msra.mxu0 %v637
    %721 = vmatpush.msra.mxu0 %v633
    %722 = vmatpush.msra.mxu0 %v629
    %723 = vmatpush.msra.mxu0 %v625
    %724 = vmatmul.f32.gmra.mxu0 %v601
    %v725 = vpop.f32.mrf.mxu0
    %v726 = vadd.f32 0.0, %v725
    %727 = vdwg.mxu0
    %728 = vmatpush.msra.mxu0 %v686
    %729 = vmatpush.msra.mxu0 %v682
    %730 = vmatpush.msra.mxu0 %v678
    %731 = vmatpush.msra.mxu0 %v674
    %732 = vmatpush.msra.mxu0 %v670
    %733 = vmatpush.msra.mxu0 %v666
    %734 = vmatpush.msra.mxu0 %v662
    %735 = vmatpush.msra.mxu0 %v658
    %736 = vmatpush.msra.mxu0 %v654
    %737 = vmatpush.msra.mxu0 %v650
    %738 = vmatpush.msra.mxu0 %v646
    %739 = vmatpush.msra.mxu0 %v642
    %740 = vmatpush.msra.mxu0 %v638
    %741 = vmatpush.msra.mxu0 %v634
    %742 = vmatpush.msra.mxu0 %v630
    %743 = vmatpush.msra.mxu0 %v626
    %744 = vmatmul.f32.gmra.mxu0 %v601
    %v745 = vpop.f32.mrf.mxu0
    %v746 = vadd.f32 0.0, %v745
    %747 = vdwg.mxu0
    %748 = vmatpush.msra.mxu0 %v687
    %749 = vmatpush.msra.mxu0 %v683
    %750 = vmatpush.msra.mxu0 %v679
    %751 = vmatpush.msra.mxu0 %v675
    %752 = vmatpush.msra.mxu0 %v671
    %753 = vmatpush.msra.mxu0 %v667
    %754 = vmatpush.msra.mxu0 %v663
    %755 = vmatpush.msra.mxu0 %v659
    %756 = vmatpush.msra.mxu0 %v655
    %757 = vmatpush.msra.mxu0 %v651
    %758 = vmatpush.msra.mxu0 %v647
    %759 = vmatpush.msra.mxu0 %v643
    %760 = vmatpush.msra.mxu0 %v639
    %761 = vmatpush.msra.mxu0 %v635
    %762 = vmatpush.msra.mxu0 %v631
    %763 = vmatpush.msra.mxu0 %v627
    %764 = vmatmul.f32.gmra.mxu0 %v601
    %v765 = vpop.f32.mrf.mxu0
    %v766 = vadd.f32 0.0, %v765
    %767 = vdwg.mxu0
    %v772 = vrot.slane %v726, 7
    %v773 = vrot.slane %v746, 6
    %v774 = vrot.slane %v766, 5
    %v775 = vsel %vm276, %v706, %v772
    %v776 = vsel %vm278, %v773, %v774
    %v777 = vsel %vm280, %v775, %v776
    %v779 = vadd.f32 %v623, %v777
    %v780 = vxor.u32 %v779, 2147483648
    %v781 = vmul.f32 %v780, 1.442695
    %v782 = vpow.pop %v781
    %v783 = vadd.f32 %v782, 1.0
    %v784 = vrcp.pop %v783
    %v785 = vmul.f32 %v783, %v784
    %v786 = vsub.f32 1.0, %v785
    %v787 = vmul.f32 %v784, %v786
    %v788 = vadd.f32 %v784, %v787
    %vm789 = vweird.f32 %v783
    %vm790 = vweird.f32 %v784
    %vm791 = vmor %vm789, %vm790
    %v792 = vsel %vm791, %v784, %v788
    %v793 = vand.u32 2147483647, %v783
    %vm794 = vcmp.eq.f32.partialorder %v793, 8.507059e+37
    %v795 = vand.u32 %v783, 2147483648
    %v796 = vor.u32 1.1754944e-38, %v795
    %v797 = vsel %vm794, %v796, %v792
    %v798 = vmul.f32 1.0, %v797
    %v800 = vrot.slane %v779, 1
    %v802 = vxor.u32 %v800, 2147483648
    %v803 = vmul.f32 %v802, 1.442695
    %v804 = vpow.pop %v803
    %v805 = vadd.f32 %v804, 1.0
    %v806 = vrcp.pop %v805
    %v807 = vmul.f32 %v805, %v806
    %v808 = vsub.f32 1.0, %v807
    %v809 = vmul.f32 %v806, %v808
    %v810 = vadd.f32 %v806, %v809
    %vm811 = vweird.f32 %v805
    %vm812 = vweird.f32 %v806
    %vm813 = vmor %vm811, %vm812
    %v814 = vsel %vm813, %v806, %v810
    %v815 = vand.u32 2147483647, %v805
    %vm816 = vcmp.eq.f32.partialorder %v815, 8.507059e+37
    %v817 = vand.u32 %v805, 2147483648
    %v818 = vor.u32 1.1754944e-38, %v817
    %v819 = vsel %vm816, %v818, %v814
    %v820 = vmul.f32 1.0, %v819
    %v821 = vrot.slane %v779, 2
    %v823 = vtanh.pop %v821
    %v824 = vrot.slane %v779, 3
    %v826 = vxor.u32 %v824, 2147483648
    %v827 = vmul.f32 %v826, 1.442695
    %v828 = vpow.pop %v827
    %v829 = vadd.f32 %v828, 1.0
    %v830 = vrcp.pop %v829
    %v831 = vmul.f32 %v829, %v830
    %v832 = vsub.f32 1.0, %v831
    %v833 = vmul.f32 %v830, %v832
    %v834 = vadd.f32 %v830, %v833
    %vm835 = vweird.f32 %v829
    %vm836 = vweird.f32 %v830
    %vm837 = vmor %vm835, %vm836
    %v838 = vsel %vm837, %v830, %v834
    %v839 = vand.u32 2147483647, %v829
    %vm840 = vcmp.eq.f32.partialorder %v839, 8.507059e+37
    %v841 = vand.u32 %v829, 2147483648
    %v842 = vor.u32 1.1754944e-38, %v841
    %v843 = vsel %vm840, %v842, %v838
    %v844 = vmul.f32 1.0, %v843
    %v845 = vmul.f32 %v820, %v599
    %v846 = vmul.f32 %v798, %v823
    %v847 = vadd.f32 %v845, %v846
    %v848 = vtanh.pop %v847
    %v849 = vmul.f32 %v844, %v848
    %850 = vst [vmem:[#allocation12 + $0x2] sm:$0x1] %v849
    %s851 = sld [smem:[#allocation2 + $0x3]]
    %s852 = sshra.s32 %s851, 3
    %s853 = sand.u32 %s851, 7
    %s854 = sshra.s32 %s851, 3
    %s855 = sand.u32 %s851, 7
    %s856 = smul.u32 %s852, 4
    %s857 = smul.u32 %s856, 8
    %s858 = sadd.s32 %s857, %s855
    %s859 = scalar_lea.vmem [#allocation8], %s858
    %v860 = vld [vmem:[%s859] ss:$8 sm:$0xf]
    %s861 = sld [smem:[#allocation6 + $0x3]]
    %s862 = sshra.s32 %s861, 3
    %s863 = sand.u32 %s861, 7
    %s864 = sshra.s32 %s861, 3
    %s865 = sand.u32 %s861, 7
    %s866 = smul.u32 %s862, 4
    %s867 = smul.u32 %s866, 8
    %s868 = sadd.s32 %s867, %s865
    %s869 = scalar_lea.vmem [#allocation9], %s868
    %v870 = vld [vmem:[%s869] ss:$8 sm:$0xf]
    %v871 = vadd.f32 %v860, %v870
    %v872 = vld [vmem:[#allocation11] sm:$0xff]
    %v873 = vld [vmem:[#allocation11 + $0x8] sm:$0xff]
    %v874 = vld [vmem:[#allocation11 + $0x10] sm:$0xff]
    %v875 = vld [vmem:[#allocation11 + $0x18] sm:$0xff]
    %v876 = vld [vmem:[#allocation11 + $0x20] sm:$0xff]
    %v877 = vld [vmem:[#allocation11 + $0x28] sm:$0xff]
    %v878 = vld [vmem:[#allocation11 + $0x30] sm:$0xff]
    %v879 = vld [vmem:[#allocation11 + $0x38] sm:$0xff]
    %v880 = vld [vmem:[#allocation11 + $0x40] sm:$0xff]
    %v881 = vld [vmem:[#allocation11 + $0x48] sm:$0xff]
    %v882 = vld [vmem:[#allocation11 + $0x50] sm:$0xff]
    %v883 = vld [vmem:[#allocation11 + $0x58] sm:$0xff]
    %v884 = vld [vmem:[#allocation11 + $0x60] sm:$0xff]
    %v885 = vld [vmem:[#allocation11 + $0x68] sm:$0xff]
    %v886 = vld [vmem:[#allocation11 + $0x70] sm:$0xff]
    %v887 = vld [vmem:[#allocation11 + $0x78] sm:$0xff]
    %v888 = vld [vmem:[#allocation11 + $0x80] sm:$0xff]
    %v889 = vld [vmem:[#allocation11 + $0x88] sm:$0xff]
    %v890 = vld [vmem:[#allocation11 + $0x90] sm:$0xff]
    %v891 = vld [vmem:[#allocation11 + $0x98] sm:$0xff]
    %v892 = vld [vmem:[#allocation11 + $0xa0] sm:$0xff]
    %v893 = vld [vmem:[#allocation11 + $0xa8] sm:$0xff]
    %v894 = vld [vmem:[#allocation11 + $0xb0] sm:$0xff]
    %v895 = vld [vmem:[#allocation11 + $0xb8] sm:$0xff]
    %v896 = vld [vmem:[#allocation11 + $0xc0] sm:$0xff]
    %v897 = vld [vmem:[#allocation11 + $0xc8] sm:$0xff]
    %v898 = vld [vmem:[#allocation11 + $0xd0] sm:$0xff]
    %v899 = vld [vmem:[#allocation11 + $0xd8] sm:$0xff]
    %v900 = vld [vmem:[#allocation11 + $0xe0] sm:$0xff]
    %v901 = vld [vmem:[#allocation11 + $0xe8] sm:$0xff]
    %v902 = vld [vmem:[#allocation11 + $0xf0] sm:$0xff]
    %v903 = vld [vmem:[#allocation11 + $0xf8] sm:$0xff]
    %v904 = vld [vmem:[#allocation11 + $0x100] sm:$0xff]
    %v905 = vld [vmem:[#allocation11 + $0x108] sm:$0xff]
    %v906 = vld [vmem:[#allocation11 + $0x110] sm:$0xff]
    %v907 = vld [vmem:[#allocation11 + $0x118] sm:$0xff]
    %v908 = vld [vmem:[#allocation11 + $0x120] sm:$0xff]
    %v909 = vld [vmem:[#allocation11 + $0x128] sm:$0xff]
    %v910 = vld [vmem:[#allocation11 + $0x130] sm:$0xff]
    %v911 = vld [vmem:[#allocation11 + $0x138] sm:$0xff]
    %v912 = vld [vmem:[#allocation11 + $0x140] sm:$0xff]
    %v913 = vld [vmem:[#allocation11 + $0x148] sm:$0xff]
    %v914 = vld [vmem:[#allocation11 + $0x150] sm:$0xff]
    %v915 = vld [vmem:[#allocation11 + $0x158] sm:$0xff]
    %v916 = vld [vmem:[#allocation11 + $0x160] sm:$0xff]
    %v917 = vld [vmem:[#allocation11 + $0x168] sm:$0xff]
    %v918 = vld [vmem:[#allocation11 + $0x170] sm:$0xff]
    %v919 = vld [vmem:[#allocation11 + $0x178] sm:$0xff]
    %v920 = vld [vmem:[#allocation11 + $0x180] sm:$0xff]
    %v921 = vld [vmem:[#allocation11 + $0x188] sm:$0xff]
    %v922 = vld [vmem:[#allocation11 + $0x190] sm:$0xff]
    %v923 = vld [vmem:[#allocation11 + $0x198] sm:$0xff]
    %v924 = vld [vmem:[#allocation11 + $0x1a0] sm:$0xff]
    %v925 = vld [vmem:[#allocation11 + $0x1a8] sm:$0xff]
    %v926 = vld [vmem:[#allocation11 + $0x1b0] sm:$0xff]
    %v927 = vld [vmem:[#allocation11 + $0x1b8] sm:$0xff]
    %v928 = vld [vmem:[#allocation11 + $0x1c0] sm:$0xff]
    %v929 = vld [vmem:[#allocation11 + $0x1c8] sm:$0xff]
    %v930 = vld [vmem:[#allocation11 + $0x1d0] sm:$0xff]
    %v931 = vld [vmem:[#allocation11 + $0x1d8] sm:$0xff]
    %v932 = vld [vmem:[#allocation11 + $0x1e0] sm:$0xff]
    %v933 = vld [vmem:[#allocation11 + $0x1e8] sm:$0xff]
    %v934 = vld [vmem:[#allocation11 + $0x1f0] sm:$0xff]
    %v935 = vld [vmem:[#allocation11 + $0x1f8] sm:$0xff]
    %936 = vmatpush.msra.mxu0 %v932
    %937 = vmatpush.msra.mxu0 %v928
    %938 = vmatpush.msra.mxu0 %v924
    %939 = vmatpush.msra.mxu0 %v920
    %940 = vmatpush.msra.mxu0 %v916
    %941 = vmatpush.msra.mxu0 %v912
    %942 = vmatpush.msra.mxu0 %v908
    %943 = vmatpush.msra.mxu0 %v904
    %944 = vmatpush.msra.mxu0 %v900
    %945 = vmatpush.msra.mxu0 %v896
    %946 = vmatpush.msra.mxu0 %v892
    %947 = vmatpush.msra.mxu0 %v888
    %948 = vmatpush.msra.mxu0 %v884
    %949 = vmatpush.msra.mxu0 %v880
    %950 = vmatpush.msra.mxu0 %v876
    %951 = vmatpush.msra.mxu0 %v872
    %952 = vmatmul.f32.gmra.mxu0 %v849
    %v953 = vpop.f32.mrf.mxu0
    %v954 = vadd.f32 0.0, %v953
    %955 = vdwg.mxu0
    %956 = vmatpush.msra.mxu0 %v933
    %957 = vmatpush.msra.mxu0 %v929
    %958 = vmatpush.msra.mxu0 %v925
    %959 = vmatpush.msra.mxu0 %v921
    %960 = vmatpush.msra.mxu0 %v917
    %961 = vmatpush.msra.mxu0 %v913
    %962 = vmatpush.msra.mxu0 %v909
    %963 = vmatpush.msra.mxu0 %v905
    %964 = vmatpush.msra.mxu0 %v901
    %965 = vmatpush.msra.mxu0 %v897
    %966 = vmatpush.msra.mxu0 %v893
    %967 = vmatpush.msra.mxu0 %v889
    %968 = vmatpush.msra.mxu0 %v885
    %969 = vmatpush.msra.mxu0 %v881
    %970 = vmatpush.msra.mxu0 %v877
    %971 = vmatpush.msra.mxu0 %v873
    %972 = vmatmul.f32.gmra.mxu0 %v849
    %v973 = vpop.f32.mrf.mxu0
    %v974 = vadd.f32 0.0, %v973
    %975 = vdwg.mxu0
    %976 = vmatpush.msra.mxu0 %v934
    %977 = vmatpush.msra.mxu0 %v930
    %978 = vmatpush.msra.mxu0 %v926
    %979 = vmatpush.msra.mxu0 %v922
    %980 = vmatpush.msra.mxu0 %v918
    %981 = vmatpush.msra.mxu0 %v914
    %982 = vmatpush.msra.mxu0 %v910
    %983 = vmatpush.msra.mxu0 %v906
    %984 = vmatpush.msra.mxu0 %v902
    %985 = vmatpush.msra.mxu0 %v898
    %986 = vmatpush.msra.mxu0 %v894
    %987 = vmatpush.msra.mxu0 %v890
    %988 = vmatpush.msra.mxu0 %v886
    %989 = vmatpush.msra.mxu0 %v882
    %990 = vmatpush.msra.mxu0 %v878
    %991 = vmatpush.msra.mxu0 %v874
    %992 = vmatmul.f32.gmra.mxu0 %v849
    %v993 = vpop.f32.mrf.mxu0
    %v994 = vadd.f32 0.0, %v993
    %995 = vdwg.mxu0
    %996 = vmatpush.msra.mxu0 %v935
    %997 = vmatpush.msra.mxu0 %v931
    %998 = vmatpush.msra.mxu0 %v927
    %999 = vmatpush.msra.mxu0 %v923
    %1000 = vmatpush.msra.mxu0 %v919
    %1001 = vmatpush.msra.mxu0 %v915
    %1002 = vmatpush.msra.mxu0 %v911
    %1003 = vmatpush.msra.mxu0 %v907
    %1004 = vmatpush.msra.mxu0 %v903
    %1005 = vmatpush.msra.mxu0 %v899
    %1006 = vmatpush.msra.mxu0 %v895
    %1007 = vmatpush.msra.mxu0 %v891
    %1008 = vmatpush.msra.mxu0 %v887
    %1009 = vmatpush.msra.mxu0 %v883
    %1010 = vmatpush.msra.mxu0 %v879
    %1011 = vmatpush.msra.mxu0 %v875
    %1012 = vmatmul.f32.gmra.mxu0 %v849
    %v1013 = vpop.f32.mrf.mxu0
    %v1014 = vadd.f32 0.0, %v1013
    %1015 = vdwg.mxu0
    %v1020 = vrot.slane %v974, 7
    %v1021 = vrot.slane %v994, 6
    %v1022 = vrot.slane %v1014, 5
    %v1023 = vsel %vm276, %v954, %v1020
    %v1024 = vsel %vm278, %v1021, %v1022
    %v1025 = vsel %vm280, %v1023, %v1024
    %v1027 = vadd.f32 %v871, %v1025
    %v1028 = vxor.u32 %v1027, 2147483648
    %v1029 = vmul.f32 %v1028, 1.442695
    %v1030 = vpow.pop %v1029
    %v1031 = vadd.f32 %v1030, 1.0
    %v1032 = vrcp.pop %v1031
    %v1033 = vmul.f32 %v1031, %v1032
    %v1034 = vsub.f32 1.0, %v1033
    %v1035 = vmul.f32 %v1032, %v1034
    %v1036 = vadd.f32 %v1032, %v1035
    %vm1037 = vweird.f32 %v1031
    %vm1038 = vweird.f32 %v1032
    %vm1039 = vmor %vm1037, %vm1038
    %v1040 = vsel %vm1039, %v1032, %v1036
    %v1041 = vand.u32 2147483647, %v1031
    %vm1042 = vcmp.eq.f32.partialorder %v1041, 8.507059e+37
    %v1043 = vand.u32 %v1031, 2147483648
    %v1044 = vor.u32 1.1754944e-38, %v1043
    %v1045 = vsel %vm1042, %v1044, %v1040
    %v1046 = vmul.f32 1.0, %v1045
    %v1048 = vrot.slane %v1027, 1
    %v1050 = vxor.u32 %v1048, 2147483648
    %v1051 = vmul.f32 %v1050, 1.442695
    %v1052 = vpow.pop %v1051
    %v1053 = vadd.f32 %v1052, 1.0
    %v1054 = vrcp.pop %v1053
    %v1055 = vmul.f32 %v1053, %v1054
    %v1056 = vsub.f32 1.0, %v1055
    %v1057 = vmul.f32 %v1054, %v1056
    %v1058 = vadd.f32 %v1054, %v1057
    %vm1059 = vweird.f32 %v1053
    %vm1060 = vweird.f32 %v1054
    %vm1061 = vmor %vm1059, %vm1060
    %v1062 = vsel %vm1061, %v1054, %v1058
    %v1063 = vand.u32 2147483647, %v1053
    %vm1064 = vcmp.eq.f32.partialorder %v1063, 8.507059e+37
    %v1065 = vand.u32 %v1053, 2147483648
    %v1066 = vor.u32 1.1754944e-38, %v1065
    %v1067 = vsel %vm1064, %v1066, %v1062
    %v1068 = vmul.f32 1.0, %v1067
    %v1069 = vrot.slane %v1027, 2
    %v1071 = vtanh.pop %v1069
    %v1072 = vrot.slane %v1027, 3
    %v1074 = vxor.u32 %v1072, 2147483648
    %v1075 = vmul.f32 %v1074, 1.442695
    %v1076 = vpow.pop %v1075
    %v1077 = vadd.f32 %v1076, 1.0
    %v1078 = vrcp.pop %v1077
    %v1079 = vmul.f32 %v1077, %v1078
    %v1080 = vsub.f32 1.0, %v1079
    %v1081 = vmul.f32 %v1078, %v1080
    %v1082 = vadd.f32 %v1078, %v1081
    %vm1083 = vweird.f32 %v1077
    %vm1084 = vweird.f32 %v1078
    %vm1085 = vmor %vm1083, %vm1084
    %v1086 = vsel %vm1085, %v1078, %v1082
    %v1087 = vand.u32 2147483647, %v1077
    %vm1088 = vcmp.eq.f32.partialorder %v1087, 8.507059e+37
    %v1089 = vand.u32 %v1077, 2147483648
    %v1090 = vor.u32 1.1754944e-38, %v1089
    %v1091 = vsel %vm1088, %v1090, %v1086
    %v1092 = vmul.f32 1.0, %v1091
    %v1093 = vmul.f32 %v1068, %v847
    %v1094 = vmul.f32 %v1046, %v1071
    %v1095 = vadd.f32 %v1093, %v1094
    %v1096 = vtanh.pop %v1095
    %v1097 = vmul.f32 %v1092, %v1096
    %1098 = vst [vmem:[#allocation12 + $0x3] sm:$0x1] %v1097
    %s1099 = sld [smem:[#allocation2 + $0x4]]
    %s1100 = sshra.s32 %s1099, 3
    %s1101 = sand.u32 %s1099, 7
    %s1102 = sshra.s32 %s1099, 3
    %s1103 = sand.u32 %s1099, 7
    %s1104 = smul.u32 %s1100, 4
    %s1105 = smul.u32 %s1104, 8
    %s1106 = sadd.s32 %s1105, %s1103
    %s1107 = scalar_lea.vmem [#allocation8], %s1106
    %v1108 = vld [vmem:[%s1107] ss:$8 sm:$0xf]
    %s1109 = sld [smem:[#allocation6 + $0x4]]
    %s1110 = sshra.s32 %s1109, 3
    %s1111 = sand.u32 %s1109, 7
    %s1112 = sshra.s32 %s1109, 3
    %s1113 = sand.u32 %s1109, 7
    %s1114 = smul.u32 %s1110, 4
    %s1115 = smul.u32 %s1114, 8
    %s1116 = sadd.s32 %s1115, %s1113
    %s1117 = scalar_lea.vmem [#allocation9], %s1116
    %v1118 = vld [vmem:[%s1117] ss:$8 sm:$0xf]
    %v1119 = vadd.f32 %v1108, %v1118
    %v1120 = vld [vmem:[#allocation11] sm:$0xff]
    %v1121 = vld [vmem:[#allocation11 + $0x8] sm:$0xff]
    %v1122 = vld [vmem:[#allocation11 + $0x10] sm:$0xff]
    %v1123 = vld [vmem:[#allocation11 + $0x18] sm:$0xff]
    %v1124 = vld [vmem:[#allocation11 + $0x20] sm:$0xff]
    %v1125 = vld [vmem:[#allocation11 + $0x28] sm:$0xff]
    %v1126 = vld [vmem:[#allocation11 + $0x30] sm:$0xff]
    %v1127 = vld [vmem:[#allocation11 + $0x38] sm:$0xff]
    %v1128 = vld [vmem:[#allocation11 + $0x40] sm:$0xff]
    %v1129 = vld [vmem:[#allocation11 + $0x48] sm:$0xff]
    %v1130 = vld [vmem:[#allocation11 + $0x50] sm:$0xff]
    %v1131 = vld [vmem:[#allocation11 + $0x58] sm:$0xff]
    %v1132 = vld [vmem:[#allocation11 + $0x60] sm:$0xff]
    %v1133 = vld [vmem:[#allocation11 + $0x68] sm:$0xff]
    %v1134 = vld [vmem:[#allocation11 + $0x70] sm:$0xff]
    %v1135 = vld [vmem:[#allocation11 + $0x78] sm:$0xff]
    %v1136 = vld [vmem:[#allocation11 + $0x80] sm:$0xff]
    %v1137 = vld [vmem:[#allocation11 + $0x88] sm:$0xff]
    %v1138 = vld [vmem:[#allocation11 + $0x90] sm:$0xff]
    %v1139 = vld [vmem:[#allocation11 + $0x98] sm:$0xff]
    %v1140 = vld [vmem:[#allocation11 + $0xa0] sm:$0xff]
    %v1141 = vld [vmem:[#allocation11 + $0xa8] sm:$0xff]
    %v1142 = vld [vmem:[#allocation11 + $0xb0] sm:$0xff]
    %v1143 = vld [vmem:[#allocation11 + $0xb8] sm:$0xff]
    %v1144 = vld [vmem:[#allocation11 + $0xc0] sm:$0xff]
    %v1145 = vld [vmem:[#allocation11 + $0xc8] sm:$0xff]
    %v1146 = vld [vmem:[#allocation11 + $0xd0] sm:$0xff]
    %v1147 = vld [vmem:[#allocation11 + $0xd8] sm:$0xff]
    %v1148 = vld [vmem:[#allocation11 + $0xe0] sm:$0xff]
    %v1149 = vld [vmem:[#allocation11 + $0xe8] sm:$0xff]
    %v1150 = vld [vmem:[#allocation11 + $0xf0] sm:$0xff]
    %v1151 = vld [vmem:[#allocation11 + $0xf8] sm:$0xff]
    %v1152 = vld [vmem:[#allocation11 + $0x100] sm:$0xff]
    %v1153 = vld [vmem:[#allocation11 + $0x108] sm:$0xff]
    %v1154 = vld [vmem:[#allocation11 + $0x110] sm:$0xff]
    %v1155 = vld [vmem:[#allocation11 + $0x118] sm:$0xff]
    %v1156 = vld [vmem:[#allocation11 + $0x120] sm:$0xff]
    %v1157 = vld [vmem:[#allocation11 + $0x128] sm:$0xff]
    %v1158 = vld [vmem:[#allocation11 + $0x130] sm:$0xff]
    %v1159 = vld [vmem:[#allocation11 + $0x138] sm:$0xff]
    %v1160 = vld [vmem:[#allocation11 + $0x140] sm:$0xff]
    %v1161 = vld [vmem:[#allocation11 + $0x148] sm:$0xff]
    %v1162 = vld [vmem:[#allocation11 + $0x150] sm:$0xff]
    %v1163 = vld [vmem:[#allocation11 + $0x158] sm:$0xff]
    %v1164 = vld [vmem:[#allocation11 + $0x160] sm:$0xff]
    %v1165 = vld [vmem:[#allocation11 + $0x168] sm:$0xff]
    %v1166 = vld [vmem:[#allocation11 + $0x170] sm:$0xff]
    %v1167 = vld [vmem:[#allocation11 + $0x178] sm:$0xff]
    %v1168 = vld [vmem:[#allocation11 + $0x180] sm:$0xff]
    %v1169 = vld [vmem:[#allocation11 + $0x188] sm:$0xff]
    %v1170 = vld [vmem:[#allocation11 + $0x190] sm:$0xff]
    %v1171 = vld [vmem:[#allocation11 + $0x198] sm:$0xff]
    %v1172 = vld [vmem:[#allocation11 + $0x1a0] sm:$0xff]
    %v1173 = vld [vmem:[#allocation11 + $0x1a8] sm:$0xff]
    %v1174 = vld [vmem:[#allocation11 + $0x1b0] sm:$0xff]
    %v1175 = vld [vmem:[#allocation11 + $0x1b8] sm:$0xff]
    %v1176 = vld [vmem:[#allocation11 + $0x1c0] sm:$0xff]
    %v1177 = vld [vmem:[#allocation11 + $0x1c8] sm:$0xff]
    %v1178 = vld [vmem:[#allocation11 + $0x1d0] sm:$0xff]
    %v1179 = vld [vmem:[#allocation11 + $0x1d8] sm:$0xff]
    %v1180 = vld [vmem:[#allocation11 + $0x1e0] sm:$0xff]
    %v1181 = vld [vmem:[#allocation11 + $0x1e8] sm:$0xff]
    %v1182 = vld [vmem:[#allocation11 + $0x1f0] sm:$0xff]
    %v1183 = vld [vmem:[#allocation11 + $0x1f8] sm:$0xff]
    %1184 = vmatpush.msra.mxu0 %v1180
    %1185 = vmatpush.msra.mxu0 %v1176
    %1186 = vmatpush.msra.mxu0 %v1172
    %1187 = vmatpush.msra.mxu0 %v1168
    %1188 = vmatpush.msra.mxu0 %v1164
    %1189 = vmatpush.msra.mxu0 %v1160
    %1190 = vmatpush.msra.mxu0 %v1156
    %1191 = vmatpush.msra.mxu0 %v1152
    %1192 = vmatpush.msra.mxu0 %v1148
    %1193 = vmatpush.msra.mxu0 %v1144
    %1194 = vmatpush.msra.mxu0 %v1140
    %1195 = vmatpush.msra.mxu0 %v1136
    %1196 = vmatpush.msra.mxu0 %v1132
    %1197 = vmatpush.msra.mxu0 %v1128
    %1198 = vmatpush.msra.mxu0 %v1124
    %1199 = vmatpush.msra.mxu0 %v1120
    %1200 = vmatmul.f32.gmra.mxu0 %v1097
    %v1201 = vpop.f32.mrf.mxu0
    %v1202 = vadd.f32 0.0, %v1201
    %1203 = vdwg.mxu0
    %1204 = vmatpush.msra.mxu0 %v1181
    %1205 = vmatpush.msra.mxu0 %v1177
    %1206 = vmatpush.msra.mxu0 %v1173
    %1207 = vmatpush.msra.mxu0 %v1169
    %1208 = vmatpush.msra.mxu0 %v1165
    %1209 = vmatpush.msra.mxu0 %v1161
    %1210 = vmatpush.msra.mxu0 %v1157
    %1211 = vmatpush.msra.mxu0 %v1153
    %1212 = vmatpush.msra.mxu0 %v1149
    %1213 = vmatpush.msra.mxu0 %v1145
    %1214 = vmatpush.msra.mxu0 %v1141
    %1215 = vmatpush.msra.mxu0 %v1137
    %1216 = vmatpush.msra.mxu0 %v1133
    %1217 = vmatpush.msra.mxu0 %v1129
    %1218 = vmatpush.msra.mxu0 %v1125
    %1219 = vmatpush.msra.mxu0 %v1121
    %1220 = vmatmul.f32.gmra.mxu0 %v1097
    %v1221 = vpop.f32.mrf.mxu0
    %v1222 = vadd.f32 0.0, %v1221
    %1223 = vdwg.mxu0
    %1224 = vmatpush.msra.mxu0 %v1182
    %1225 = vmatpush.msra.mxu0 %v1178
    %1226 = vmatpush.msra.mxu0 %v1174
    %1227 = vmatpush.msra.mxu0 %v1170
    %1228 = vmatpush.msra.mxu0 %v1166
    %1229 = vmatpush.msra.mxu0 %v1162
    %1230 = vmatpush.msra.mxu0 %v1158
    %1231 = vmatpush.msra.mxu0 %v1154
    %1232 = vmatpush.msra.mxu0 %v1150
    %1233 = vmatpush.msra.mxu0 %v1146
    %1234 = vmatpush.msra.mxu0 %v1142
    %1235 = vmatpush.msra.mxu0 %v1138
    %1236 = vmatpush.msra.mxu0 %v1134
    %1237 = vmatpush.msra.mxu0 %v1130
    %1238 = vmatpush.msra.mxu0 %v1126
    %1239 = vmatpush.msra.mxu0 %v1122
    %1240 = vmatmul.f32.gmra.mxu0 %v1097
    %v1241 = vpop.f32.mrf.mxu0
    %v1242 = vadd.f32 0.0, %v1241
    %1243 = vdwg.mxu0
    %1244 = vmatpush.msra.mxu0 %v1183
    %1245 = vmatpush.msra.mxu0 %v1179
    %1246 = vmatpush.msra.mxu0 %v1175
    %1247 = vmatpush.msra.mxu0 %v1171
    %1248 = vmatpush.msra.mxu0 %v1167
    %1249 = vmatpush.msra.mxu0 %v1163
    %1250 = vmatpush.msra.mxu0 %v1159
    %1251 = vmatpush.msra.mxu0 %v1155
    %1252 = vmatpush.msra.mxu0 %v1151
    %1253 = vmatpush.msra.mxu0 %v1147
    %1254 = vmatpush.msra.mxu0 %v1143
    %1255 = vmatpush.msra.mxu0 %v1139
    %1256 = vmatpush.msra.mxu0 %v1135
    %1257 = vmatpush.msra.mxu0 %v1131
    %1258 = vmatpush.msra.mxu0 %v1127
    %1259 = vmatpush.msra.mxu0 %v1123
    %1260 = vmatmul.f32.gmra.mxu0 %v1097
    %v1261 = vpop.f32.mrf.mxu0
    %v1262 = vadd.f32 0.0, %v1261
    %1263 = vdwg.mxu0
    %v1268 = vrot.slane %v1222, 7
    %v1269 = vrot.slane %v1242, 6
    %v1270 = vrot.slane %v1262, 5
    %v1271 = vsel %vm276, %v1202, %v1268
    %v1272 = vsel %vm278, %v1269, %v1270
    %v1273 = vsel %vm280, %v1271, %v1272
    %v1275 = vadd.f32 %v1119, %v1273
    %v1276 = vxor.u32 %v1275, 2147483648
    %v1277 = vmul.f32 %v1276, 1.442695
    %v1278 = vpow.pop %v1277
    %v1279 = vadd.f32 %v1278, 1.0
    %v1280 = vrcp.pop %v1279
    %v1281 = vmul.f32 %v1279, %v1280
    %v1282 = vsub.f32 1.0, %v1281
    %v1283 = vmul.f32 %v1280, %v1282
    %v1284 = vadd.f32 %v1280, %v1283
    %vm1285 = vweird.f32 %v1279
    %vm1286 = vweird.f32 %v1280
    %vm1287 = vmor %vm1285, %vm1286
    %v1288 = vsel %vm1287, %v1280, %v1284
    %v1289 = vand.u32 2147483647, %v1279
    %vm1290 = vcmp.eq.f32.partialorder %v1289, 8.507059e+37
    %v1291 = vand.u32 %v1279, 2147483648
    %v1292 = vor.u32 1.1754944e-38, %v1291
    %v1293 = vsel %vm1290, %v1292, %v1288
    %v1294 = vmul.f32 1.0, %v1293
    %v1296 = vrot.slane %v1275, 1
    %v1298 = vxor.u32 %v1296, 2147483648
    %v1299 = vmul.f32 %v1298, 1.442695
    %v1300 = vpow.pop %v1299
    %v1301 = vadd.f32 %v1300, 1.0
    %v1302 = vrcp.pop %v1301
    %v1303 = vmul.f32 %v1301, %v1302
    %v1304 = vsub.f32 1.0, %v1303
    %v1305 = vmul.f32 %v1302, %v1304
    %v1306 = vadd.f32 %v1302, %v1305
    %vm1307 = vweird.f32 %v1301
    %vm1308 = vweird.f32 %v1302
    %vm1309 = vmor %vm1307, %vm1308
    %v1310 = vsel %vm1309, %v1302, %v1306
    %v1311 = vand.u32 2147483647, %v1301
    %vm1312 = vcmp.eq.f32.partialorder %v1311, 8.507059e+37
    %v1313 = vand.u32 %v1301, 2147483648
    %v1314 = vor.u32 1.1754944e-38, %v1313
    %v1315 = vsel %vm1312, %v1314, %v1310
    %v1316 = vmul.f32 1.0, %v1315
    %v1317 = vrot.slane %v1275, 2
    %v1319 = vtanh.pop %v1317
    %v1320 = vrot.slane %v1275, 3
    %v1322 = vxor.u32 %v1320, 2147483648
    %v1323 = vmul.f32 %v1322, 1.442695
    %v1324 = vpow.pop %v1323
    %v1325 = vadd.f32 %v1324, 1.0
    %v1326 = vrcp.pop %v1325
    %v1327 = vmul.f32 %v1325, %v1326
    %v1328 = vsub.f32 1.0, %v1327
    %v1329 = vmul.f32 %v1326, %v1328
    %v1330 = vadd.f32 %v1326, %v1329
    %vm1331 = vweird.f32 %v1325
    %vm1332 = vweird.f32 %v1326
    %vm1333 = vmor %vm1331, %vm1332
    %v1334 = vsel %vm1333, %v1326, %v1330
    %v1335 = vand.u32 2147483647, %v1325
    %vm1336 = vcmp.eq.f32.partialorder %v1335, 8.507059e+37
    %v1337 = vand.u32 %v1325, 2147483648
    %v1338 = vor.u32 1.1754944e-38, %v1337
    %v1339 = vsel %vm1336, %v1338, %v1334
    %v1340 = vmul.f32 1.0, %v1339
    %v1341 = vmul.f32 %v1316, %v1095
    %v1342 = vmul.f32 %v1294, %v1319
    %v1343 = vadd.f32 %v1341, %v1342
    %v1344 = vtanh.pop %v1343
    %v1345 = vmul.f32 %v1340, %v1344
    %1346 = vst [vmem:[#allocation12 + $0x4] sm:$0x1] %v1345
    %s1347 = sld [smem:[#allocation2 + $0x5]]
    %s1348 = sshra.s32 %s1347, 3
    %s1349 = sand.u32 %s1347, 7
    %s1350 = sshra.s32 %s1347, 3
    %s1351 = sand.u32 %s1347, 7
    %s1352 = smul.u32 %s1348, 4
    %s1353 = smul.u32 %s1352, 8
    %s1354 = sadd.s32 %s1353, %s1351
    %s1355 = scalar_lea.vmem [#allocation8], %s1354
    %v1356 = vld [vmem:[%s1355] ss:$8 sm:$0xf]
    %s1357 = sld [smem:[#allocation6 + $0x5]]
    %s1358 = sshra.s32 %s1357, 3
    %s1359 = sand.u32 %s1357, 7
    %s1360 = sshra.s32 %s1357, 3
    %s1361 = sand.u32 %s1357, 7
    %s1362 = smul.u32 %s1358, 4
    %s1363 = smul.u32 %s1362, 8
    %s1364 = sadd.s32 %s1363, %s1361
    %s1365 = scalar_lea.vmem [#allocation9], %s1364
    %v1366 = vld [vmem:[%s1365] ss:$8 sm:$0xf]
    %v1367 = vadd.f32 %v1356, %v1366
    %v1368 = vld [vmem:[#allocation11] sm:$0xff]
    %v1369 = vld [vmem:[#allocation11 + $0x8] sm:$0xff]
    %v1370 = vld [vmem:[#allocation11 + $0x10] sm:$0xff]
    %v1371 = vld [vmem:[#allocation11 + $0x18] sm:$0xff]
    %v1372 = vld [vmem:[#allocation11 + $0x20] sm:$0xff]
    %v1373 = vld [vmem:[#allocation11 + $0x28] sm:$0xff]
    %v1374 = vld [vmem:[#allocation11 + $0x30] sm:$0xff]
    %v1375 = vld [vmem:[#allocation11 + $0x38] sm:$0xff]
    %v1376 = vld [vmem:[#allocation11 + $0x40] sm:$0xff]
    %v1377 = vld [vmem:[#allocation11 + $0x48] sm:$0xff]
    %v1378 = vld [vmem:[#allocation11 + $0x50] sm:$0xff]
    %v1379 = vld [vmem:[#allocation11 + $0x58] sm:$0xff]
    %v1380 = vld [vmem:[#allocation11 + $0x60] sm:$0xff]
    %v1381 = vld [vmem:[#allocation11 + $0x68] sm:$0xff]
    %v1382 = vld [vmem:[#allocation11 + $0x70] sm:$0xff]
    %v1383 = vld [vmem:[#allocation11 + $0x78] sm:$0xff]
    %v1384 = vld [vmem:[#allocation11 + $0x80] sm:$0xff]
    %v1385 = vld [vmem:[#allocation11 + $0x88] sm:$0xff]
    %v1386 = vld [vmem:[#allocation11 + $0x90] sm:$0xff]
    %v1387 = vld [vmem:[#allocation11 + $0x98] sm:$0xff]
    %v1388 = vld [vmem:[#allocation11 + $0xa0] sm:$0xff]
    %v1389 = vld [vmem:[#allocation11 + $0xa8] sm:$0xff]
    %v1390 = vld [vmem:[#allocation11 + $0xb0] sm:$0xff]
    %v1391 = vld [vmem:[#allocation11 + $0xb8] sm:$0xff]
    %v1392 = vld [vmem:[#allocation11 + $0xc0] sm:$0xff]
    %v1393 = vld [vmem:[#allocation11 + $0xc8] sm:$0xff]
    %v1394 = vld [vmem:[#allocation11 + $0xd0] sm:$0xff]
    %v1395 = vld [vmem:[#allocation11 + $0xd8] sm:$0xff]
    %v1396 = vld [vmem:[#allocation11 + $0xe0] sm:$0xff]
    %v1397 = vld [vmem:[#allocation11 + $0xe8] sm:$0xff]
    %v1398 = vld [vmem:[#allocation11 + $0xf0] sm:$0xff]
    %v1399 = vld [vmem:[#allocation11 + $0xf8] sm:$0xff]
    %v1400 = vld [vmem:[#allocation11 + $0x100] sm:$0xff]
    %v1401 = vld [vmem:[#allocation11 + $0x108] sm:$0xff]
    %v1402 = vld [vmem:[#allocation11 + $0x110] sm:$0xff]
    %v1403 = vld [vmem:[#allocation11 + $0x118] sm:$0xff]
    %v1404 = vld [vmem:[#allocation11 + $0x120] sm:$0xff]
    %v1405 = vld [vmem:[#allocation11 + $0x128] sm:$0xff]
    %v1406 = vld [vmem:[#allocation11 + $0x130] sm:$0xff]
    %v1407 = vld [vmem:[#allocation11 + $0x138] sm:$0xff]
    %v1408 = vld [vmem:[#allocation11 + $0x140] sm:$0xff]
    %v1409 = vld [vmem:[#allocation11 + $0x148] sm:$0xff]
    %v1410 = vld [vmem:[#allocation11 + $0x150] sm:$0xff]
    %v1411 = vld [vmem:[#allocation11 + $0x158] sm:$0xff]
    %v1412 = vld [vmem:[#allocation11 + $0x160] sm:$0xff]
    %v1413 = vld [vmem:[#allocation11 + $0x168] sm:$0xff]
    %v1414 = vld [vmem:[#allocation11 + $0x170] sm:$0xff]
    %v1415 = vld [vmem:[#allocation11 + $0x178] sm:$0xff]
    %v1416 = vld [vmem:[#allocation11 + $0x180] sm:$0xff]
    %v1417 = vld [vmem:[#allocation11 + $0x188] sm:$0xff]
    %v1418 = vld [vmem:[#allocation11 + $0x190] sm:$0xff]
    %v1419 = vld [vmem:[#allocation11 + $0x198] sm:$0xff]
    %v1420 = vld [vmem:[#allocation11 + $0x1a0] sm:$0xff]
    %v1421 = vld [vmem:[#allocation11 + $0x1a8] sm:$0xff]
    %v1422 = vld [vmem:[#allocation11 + $0x1b0] sm:$0xff]
    %v1423 = vld [vmem:[#allocation11 + $0x1b8] sm:$0xff]
    %v1424 = vld [vmem:[#allocation11 + $0x1c0] sm:$0xff]
    %v1425 = vld [vmem:[#allocation11 + $0x1c8] sm:$0xff]
    %v1426 = vld [vmem:[#allocation11 + $0x1d0] sm:$0xff]
    %v1427 = vld [vmem:[#allocation11 + $0x1d8] sm:$0xff]
    %v1428 = vld [vmem:[#allocation11 + $0x1e0] sm:$0xff]
    %v1429 = vld [vmem:[#allocation11 + $0x1e8] sm:$0xff]
    %v1430 = vld [vmem:[#allocation11 + $0x1f0] sm:$0xff]
    %v1431 = vld [vmem:[#allocation11 + $0x1f8] sm:$0xff]
    %1432 = vmatpush.msra.mxu0 %v1428
    %1433 = vmatpush.msra.mxu0 %v1424
    %1434 = vmatpush.msra.mxu0 %v1420
    %1435 = vmatpush.msra.mxu0 %v1416
    %1436 = vmatpush.msra.mxu0 %v1412
    %1437 = vmatpush.msra.mxu0 %v1408
    %1438 = vmatpush.msra.mxu0 %v1404
    %1439 = vmatpush.msra.mxu0 %v1400
    %1440 = vmatpush.msra.mxu0 %v1396
    %1441 = vmatpush.msra.mxu0 %v1392
    %1442 = vmatpush.msra.mxu0 %v1388
    %1443 = vmatpush.msra.mxu0 %v1384
    %1444 = vmatpush.msra.mxu0 %v1380
    %1445 = vmatpush.msra.mxu0 %v1376
    %1446 = vmatpush.msra.mxu0 %v1372
    %1447 = vmatpush.msra.mxu0 %v1368
    %1448 = vmatmul.f32.gmra.mxu0 %v1345
    %v1449 = vpop.f32.mrf.mxu0
    %v1450 = vadd.f32 0.0, %v1449
    %1451 = vdwg.mxu0
    %1452 = vmatpush.msra.mxu0 %v1429
    %1453 = vmatpush.msra.mxu0 %v1425
    %1454 = vmatpush.msra.mxu0 %v1421
    %1455 = vmatpush.msra.mxu0 %v1417
    %1456 = vmatpush.msra.mxu0 %v1413
    %1457 = vmatpush.msra.mxu0 %v1409
    %1458 = vmatpush.msra.mxu0 %v1405
    %1459 = vmatpush.msra.mxu0 %v1401
    %1460 = vmatpush.msra.mxu0 %v1397
    %1461 = vmatpush.msra.mxu0 %v1393
    %1462 = vmatpush.msra.mxu0 %v1389
    %1463 = vmatpush.msra.mxu0 %v1385
    %1464 = vmatpush.msra.mxu0 %v1381
    %1465 = vmatpush.msra.mxu0 %v1377
    %1466 = vmatpush.msra.mxu0 %v1373
    %1467 = vmatpush.msra.mxu0 %v1369
    %1468 = vmatmul.f32.gmra.mxu0 %v1345
    %v1469 = vpop.f32.mrf.mxu0
    %v1470 = vadd.f32 0.0, %v1469
    %1471 = vdwg.mxu0
    %1472 = vmatpush.msra.mxu0 %v1430
    %1473 = vmatpush.msra.mxu0 %v1426
    %1474 = vmatpush.msra.mxu0 %v1422
    %1475 = vmatpush.msra.mxu0 %v1418
    %1476 = vmatpush.msra.mxu0 %v1414
    %1477 = vmatpush.msra.mxu0 %v1410
    %1478 = vmatpush.msra.mxu0 %v1406
    %1479 = vmatpush.msra.mxu0 %v1402
    %1480 = vmatpush.msra.mxu0 %v1398
    %1481 = vmatpush.msra.mxu0 %v1394
    %1482 = vmatpush.msra.mxu0 %v1390
    %1483 = vmatpush.msra.mxu0 %v1386
    %1484 = vmatpush.msra.mxu0 %v1382
    %1485 = vmatpush.msra.mxu0 %v1378
    %1486 = vmatpush.msra.mxu0 %v1374
    %1487 = vmatpush.msra.mxu0 %v1370
    %1488 = vmatmul.f32.gmra.mxu0 %v1345
    %v1489 = vpop.f32.mrf.mxu0
    %v1490 = vadd.f32 0.0, %v1489
    %1491 = vdwg.mxu0
    %1492 = vmatpush.msra.mxu0 %v1431
    %1493 = vmatpush.msra.mxu0 %v1427
    %1494 = vmatpush.msra.mxu0 %v1423
    %1495 = vmatpush.msra.mxu0 %v1419
    %1496 = vmatpush.msra.mxu0 %v1415
    %1497 = vmatpush.msra.mxu0 %v1411
    %1498 = vmatpush.msra.mxu0 %v1407
    %1499 = vmatpush.msra.mxu0 %v1403
    %1500 = vmatpush.msra.mxu0 %v1399
    %1501 = vmatpush.msra.mxu0 %v1395
    %1502 = vmatpush.msra.mxu0 %v1391
    %1503 = vmatpush.msra.mxu0 %v1387
    %1504 = vmatpush.msra.mxu0 %v1383
    %1505 = vmatpush.msra.mxu0 %v1379
    %1506 = vmatpush.msra.mxu0 %v1375
    %1507 = vmatpush.msra.mxu0 %v1371
    %1508 = vmatmul.f32.gmra.mxu0 %v1345
    %v1509 = vpop.f32.mrf.mxu0
    %v1510 = vadd.f32 0.0, %v1509
    %1511 = vdwg.mxu0
    %v1516 = vrot.slane %v1470, 7
    %v1517 = vrot.slane %v1490, 6
    %v1518 = vrot.slane %v1510, 5
    %v1519 = vsel %vm276, %v1450, %v1516
    %v1520 = vsel %vm278, %v1517, %v1518
    %v1521 = vsel %vm280, %v1519, %v1520
    %v1523 = vadd.f32 %v1367, %v1521
    %v1524 = vxor.u32 %v1523, 2147483648
    %v1525 = vmul.f32 %v1524, 1.442695
    %v1526 = vpow.pop %v1525
    %v1527 = vadd.f32 %v1526, 1.0
    %v1528 = vrcp.pop %v1527
    %v1529 = vmul.f32 %v1527, %v1528
    %v1530 = vsub.f32 1.0, %v1529
    %v1531 = vmul.f32 %v1528, %v1530
    %v1532 = vadd.f32 %v1528, %v1531
    %vm1533 = vweird.f32 %v1527
    %vm1534 = vweird.f32 %v1528
    %vm1535 = vmor %vm1533, %vm1534
    %v1536 = vsel %vm1535, %v1528, %v1532
    %v1537 = vand.u32 2147483647, %v1527
    %vm1538 = vcmp.eq.f32.partialorder %v1537, 8.507059e+37
    %v1539 = vand.u32 %v1527, 2147483648
    %v1540 = vor.u32 1.1754944e-38, %v1539
    %v1541 = vsel %vm1538, %v1540, %v1536
    %v1542 = vmul.f32 1.0, %v1541
    %v1544 = vrot.slane %v1523, 1
    %v1546 = vxor.u32 %v1544, 2147483648
    %v1547 = vmul.f32 %v1546, 1.442695
    %v1548 = vpow.pop %v1547
    %v1549 = vadd.f32 %v1548, 1.0
    %v1550 = vrcp.pop %v1549
    %v1551 = vmul.f32 %v1549, %v1550
    %v1552 = vsub.f32 1.0, %v1551
    %v1553 = vmul.f32 %v1550, %v1552
    %v1554 = vadd.f32 %v1550, %v1553
    %vm1555 = vweird.f32 %v1549
    %vm1556 = vweird.f32 %v1550
    %vm1557 = vmor %vm1555, %vm1556
    %v1558 = vsel %vm1557, %v1550, %v1554
    %v1559 = vand.u32 2147483647, %v1549
    %vm1560 = vcmp.eq.f32.partialorder %v1559, 8.507059e+37
    %v1561 = vand.u32 %v1549, 2147483648
    %v1562 = vor.u32 1.1754944e-38, %v1561
    %v1563 = vsel %vm1560, %v1562, %v1558
    %v1564 = vmul.f32 1.0, %v1563
    %v1565 = vrot.slane %v1523, 2
    %v1567 = vtanh.pop %v1565
    %v1568 = vrot.slane %v1523, 3
    %v1570 = vxor.u32 %v1568, 2147483648
    %v1571 = vmul.f32 %v1570, 1.442695
    %v1572 = vpow.pop %v1571
    %v1573 = vadd.f32 %v1572, 1.0
    %v1574 = vrcp.pop %v1573
    %v1575 = vmul.f32 %v1573, %v1574
    %v1576 = vsub.f32 1.0, %v1575
    %v1577 = vmul.f32 %v1574, %v1576
    %v1578 = vadd.f32 %v1574, %v1577
    %vm1579 = vweird.f32 %v1573
    %vm1580 = vweird.f32 %v1574
    %vm1581 = vmor %vm1579, %vm1580
    %v1582 = vsel %vm1581, %v1574, %v1578
    %v1583 = vand.u32 2147483647, %v1573
    %vm1584 = vcmp.eq.f32.partialorder %v1583, 8.507059e+37
    %v1585 = vand.u32 %v1573, 2147483648
    %v1586 = vor.u32 1.1754944e-38, %v1585
    %v1587 = vsel %vm1584, %v1586, %v1582
    %v1588 = vmul.f32 1.0, %v1587
    %v1589 = vmul.f32 %v1564, %v1343
    %v1590 = vmul.f32 %v1542, %v1567
    %v1591 = vadd.f32 %v1589, %v1590
    %v1592 = vtanh.pop %v1591
    %v1593 = vmul.f32 %v1588, %v1592
    %1594 = vst [vmem:[#allocation12 + $0x5] sm:$0x1] %v1593
    %s1595 = sld [smem:[#allocation2 + $0x6]]
    %s1596 = sshra.s32 %s1595, 3
    %s1597 = sand.u32 %s1595, 7
    %s1598 = sshra.s32 %s1595, 3
    %s1599 = sand.u32 %s1595, 7
    %s1600 = smul.u32 %s1596, 4
    %s1601 = smul.u32 %s1600, 8
    %s1602 = sadd.s32 %s1601, %s1599
    %s1603 = scalar_lea.vmem [#allocation8], %s1602
    %v1604 = vld [vmem:[%s1603] ss:$8 sm:$0xf]
    %s1605 = sld [smem:[#allocation6 + $0x6]]
    %s1606 = sshra.s32 %s1605, 3
    %s1607 = sand.u32 %s1605, 7
    %s1608 = sshra.s32 %s1605, 3
    %s1609 = sand.u32 %s1605, 7
    %s1610 = smul.u32 %s1606, 4
    %s1611 = smul.u32 %s1610, 8
    %s1612 = sadd.s32 %s1611, %s1609
    %s1613 = scalar_lea.vmem [#allocation9], %s1612
    %v1614 = vld [vmem:[%s1613] ss:$8 sm:$0xf]
    %v1615 = vadd.f32 %v1604, %v1614
    %v1616 = vld [vmem:[#allocation11] sm:$0xff]
    %v1617 = vld [vmem:[#allocation11 + $0x8] sm:$0xff]
    %v1618 = vld [vmem:[#allocation11 + $0x10] sm:$0xff]
    %v1619 = vld [vmem:[#allocation11 + $0x18] sm:$0xff]
    %v1620 = vld [vmem:[#allocation11 + $0x20] sm:$0xff]
    %v1621 = vld [vmem:[#allocation11 + $0x28] sm:$0xff]
    %v1622 = vld [vmem:[#allocation11 + $0x30] sm:$0xff]
    %v1623 = vld [vmem:[#allocation11 + $0x38] sm:$0xff]
    %v1624 = vld [vmem:[#allocation11 + $0x40] sm:$0xff]
    %v1625 = vld [vmem:[#allocation11 + $0x48] sm:$0xff]
    %v1626 = vld [vmem:[#allocation11 + $0x50] sm:$0xff]
    %v1627 = vld [vmem:[#allocation11 + $0x58] sm:$0xff]
    %v1628 = vld [vmem:[#allocation11 + $0x60] sm:$0xff]
    %v1629 = vld [vmem:[#allocation11 + $0x68] sm:$0xff]
    %v1630 = vld [vmem:[#allocation11 + $0x70] sm:$0xff]
    %v1631 = vld [vmem:[#allocation11 + $0x78] sm:$0xff]
    %v1632 = vld [vmem:[#allocation11 + $0x80] sm:$0xff]
    %v1633 = vld [vmem:[#allocation11 + $0x88] sm:$0xff]
    %v1634 = vld [vmem:[#allocation11 + $0x90] sm:$0xff]
    %v1635 = vld [vmem:[#allocation11 + $0x98] sm:$0xff]
    %v1636 = vld [vmem:[#allocation11 + $0xa0] sm:$0xff]
    %v1637 = vld [vmem:[#allocation11 + $0xa8] sm:$0xff]
    %v1638 = vld [vmem:[#allocation11 + $0xb0] sm:$0xff]
    %v1639 = vld [vmem:[#allocation11 + $0xb8] sm:$0xff]
    %v1640 = vld [vmem:[#allocation11 + $0xc0] sm:$0xff]
    %v1641 = vld [vmem:[#allocation11 + $0xc8] sm:$0xff]
    %v1642 = vld [vmem:[#allocation11 + $0xd0] sm:$0xff]
    %v1643 = vld [vmem:[#allocation11 + $0xd8] sm:$0xff]
    %v1644 = vld [vmem:[#allocation11 + $0xe0] sm:$0xff]
    %v1645 = vld [vmem:[#allocation11 + $0xe8] sm:$0xff]
    %v1646 = vld [vmem:[#allocation11 + $0xf0] sm:$0xff]
    %v1647 = vld [vmem:[#allocation11 + $0xf8] sm:$0xff]
    %v1648 = vld [vmem:[#allocation11 + $0x100] sm:$0xff]
    %v1649 = vld [vmem:[#allocation11 + $0x108] sm:$0xff]
    %v1650 = vld [vmem:[#allocation11 + $0x110] sm:$0xff]
    %v1651 = vld [vmem:[#allocation11 + $0x118] sm:$0xff]
    %v1652 = vld [vmem:[#allocation11 + $0x120] sm:$0xff]
    %v1653 = vld [vmem:[#allocation11 + $0x128] sm:$0xff]
    %v1654 = vld [vmem:[#allocation11 + $0x130] sm:$0xff]
    %v1655 = vld [vmem:[#allocation11 + $0x138] sm:$0xff]
    %v1656 = vld [vmem:[#allocation11 + $0x140] sm:$0xff]
    %v1657 = vld [vmem:[#allocation11 + $0x148] sm:$0xff]
    %v1658 = vld [vmem:[#allocation11 + $0x150] sm:$0xff]
    %v1659 = vld [vmem:[#allocation11 + $0x158] sm:$0xff]
    %v1660 = vld [vmem:[#allocation11 + $0x160] sm:$0xff]
    %v1661 = vld [vmem:[#allocation11 + $0x168] sm:$0xff]
    %v1662 = vld [vmem:[#allocation11 + $0x170] sm:$0xff]
    %v1663 = vld [vmem:[#allocation11 + $0x178] sm:$0xff]
    %v1664 = vld [vmem:[#allocation11 + $0x180] sm:$0xff]
    %v1665 = vld [vmem:[#allocation11 + $0x188] sm:$0xff]
    %v1666 = vld [vmem:[#allocation11 + $0x190] sm:$0xff]
    %v1667 = vld [vmem:[#allocation11 + $0x198] sm:$0xff]
    %v1668 = vld [vmem:[#allocation11 + $0x1a0] sm:$0xff]
    %v1669 = vld [vmem:[#allocation11 + $0x1a8] sm:$0xff]
    %v1670 = vld [vmem:[#allocation11 + $0x1b0] sm:$0xff]
    %v1671 = vld [vmem:[#allocation11 + $0x1b8] sm:$0xff]
    %v1672 = vld [vmem:[#allocation11 + $0x1c0] sm:$0xff]
    %v1673 = vld [vmem:[#allocation11 + $0x1c8] sm:$0xff]
    %v1674 = vld [vmem:[#allocation11 + $0x1d0] sm:$0xff]
    %v1675 = vld [vmem:[#allocation11 + $0x1d8] sm:$0xff]
    %v1676 = vld [vmem:[#allocation11 + $0x1e0] sm:$0xff]
    %v1677 = vld [vmem:[#allocation11 + $0x1e8] sm:$0xff]
    %v1678 = vld [vmem:[#allocation11 + $0x1f0] sm:$0xff]
    %v1679 = vld [vmem:[#allocation11 + $0x1f8] sm:$0xff]
    %1680 = vmatpush.msra.mxu0 %v1676
    %1681 = vmatpush.msra.mxu0 %v1672
    %1682 = vmatpush.msra.mxu0 %v1668
    %1683 = vmatpush.msra.mxu0 %v1664
    %1684 = vmatpush.msra.mxu0 %v1660
    %1685 = vmatpush.msra.mxu0 %v1656
    %1686 = vmatpush.msra.mxu0 %v1652
    %1687 = vmatpush.msra.mxu0 %v1648
    %1688 = vmatpush.msra.mxu0 %v1644
    %1689 = vmatpush.msra.mxu0 %v1640
    %1690 = vmatpush.msra.mxu0 %v1636
    %1691 = vmatpush.msra.mxu0 %v1632
    %1692 = vmatpush.msra.mxu0 %v1628
    %1693 = vmatpush.msra.mxu0 %v1624
    %1694 = vmatpush.msra.mxu0 %v1620
    %1695 = vmatpush.msra.mxu0 %v1616
    %1696 = vmatmul.f32.gmra.mxu0 %v1593
    %v1697 = vpop.f32.mrf.mxu0
    %v1698 = vadd.f32 0.0, %v1697
    %1699 = vdwg.mxu0
    %1700 = vmatpush.msra.mxu0 %v1677
    %1701 = vmatpush.msra.mxu0 %v1673
    %1702 = vmatpush.msra.mxu0 %v1669
    %1703 = vmatpush.msra.mxu0 %v1665
    %1704 = vmatpush.msra.mxu0 %v1661
    %1705 = vmatpush.msra.mxu0 %v1657
    %1706 = vmatpush.msra.mxu0 %v1653
    %1707 = vmatpush.msra.mxu0 %v1649
    %1708 = vmatpush.msra.mxu0 %v1645
    %1709 = vmatpush.msra.mxu0 %v1641
    %1710 = vmatpush.msra.mxu0 %v1637
    %1711 = vmatpush.msra.mxu0 %v1633
    %1712 = vmatpush.msra.mxu0 %v1629
    %1713 = vmatpush.msra.mxu0 %v1625
    %1714 = vmatpush.msra.mxu0 %v1621
    %1715 = vmatpush.msra.mxu0 %v1617
    %1716 = vmatmul.f32.gmra.mxu0 %v1593
    %v1717 = vpop.f32.mrf.mxu0
    %v1718 = vadd.f32 0.0, %v1717
    %1719 = vdwg.mxu0
    %1720 = vmatpush.msra.mxu0 %v1678
    %1721 = vmatpush.msra.mxu0 %v1674
    %1722 = vmatpush.msra.mxu0 %v1670
    %1723 = vmatpush.msra.mxu0 %v1666
    %1724 = vmatpush.msra.mxu0 %v1662
    %1725 = vmatpush.msra.mxu0 %v1658
    %1726 = vmatpush.msra.mxu0 %v1654
    %1727 = vmatpush.msra.mxu0 %v1650
    %1728 = vmatpush.msra.mxu0 %v1646
    %1729 = vmatpush.msra.mxu0 %v1642
    %1730 = vmatpush.msra.mxu0 %v1638
    %1731 = vmatpush.msra.mxu0 %v1634
    %1732 = vmatpush.msra.mxu0 %v1630
    %1733 = vmatpush.msra.mxu0 %v1626
    %1734 = vmatpush.msra.mxu0 %v1622
    %1735 = vmatpush.msra.mxu0 %v1618
    %1736 = vmatmul.f32.gmra.mxu0 %v1593
    %v1737 = vpop.f32.mrf.mxu0
    %v1738 = vadd.f32 0.0, %v1737
    %1739 = vdwg.mxu0
    %1740 = vmatpush.msra.mxu0 %v1679
    %1741 = vmatpush.msra.mxu0 %v1675
    %1742 = vmatpush.msra.mxu0 %v1671
    %1743 = vmatpush.msra.mxu0 %v1667
    %1744 = vmatpush.msra.mxu0 %v1663
    %1745 = vmatpush.msra.mxu0 %v1659
    %1746 = vmatpush.msra.mxu0 %v1655
    %1747 = vmatpush.msra.mxu0 %v1651
    %1748 = vmatpush.msra.mxu0 %v1647
    %1749 = vmatpush.msra.mxu0 %v1643
    %1750 = vmatpush.msra.mxu0 %v1639
    %1751 = vmatpush.msra.mxu0 %v1635
    %1752 = vmatpush.msra.mxu0 %v1631
    %1753 = vmatpush.msra.mxu0 %v1627
    %1754 = vmatpush.msra.mxu0 %v1623
    %1755 = vmatpush.msra.mxu0 %v1619
    %1756 = vmatmul.f32.gmra.mxu0 %v1593
    %v1757 = vpop.f32.mrf.mxu0
    %v1758 = vadd.f32 0.0, %v1757
    %1759 = vdwg.mxu0
    %v1764 = vrot.slane %v1718, 7
    %v1765 = vrot.slane %v1738, 6
    %v1766 = vrot.slane %v1758, 5
    %v1767 = vsel %vm276, %v1698, %v1764
    %v1768 = vsel %vm278, %v1765, %v1766
    %v1769 = vsel %vm280, %v1767, %v1768
    %v1771 = vadd.f32 %v1615, %v1769
    %v1772 = vxor.u32 %v1771, 2147483648
    %v1773 = vmul.f32 %v1772, 1.442695
    %v1774 = vpow.pop %v1773
    %v1775 = vadd.f32 %v1774, 1.0
    %v1776 = vrcp.pop %v1775
    %v1777 = vmul.f32 %v1775, %v1776
    %v1778 = vsub.f32 1.0, %v1777
    %v1779 = vmul.f32 %v1776, %v1778
    %v1780 = vadd.f32 %v1776, %v1779
    %vm1781 = vweird.f32 %v1775
    %vm1782 = vweird.f32 %v1776
    %vm1783 = vmor %vm1781, %vm1782
    %v1784 = vsel %vm1783, %v1776, %v1780
    %v1785 = vand.u32 2147483647, %v1775
    %vm1786 = vcmp.eq.f32.partialorder %v1785, 8.507059e+37
    %v1787 = vand.u32 %v1775, 2147483648
    %v1788 = vor.u32 1.1754944e-38, %v1787
    %v1789 = vsel %vm1786, %v1788, %v1784
    %v1790 = vmul.f32 1.0, %v1789
    %v1792 = vrot.slane %v1771, 1
    %v1794 = vxor.u32 %v1792, 2147483648
    %v1795 = vmul.f32 %v1794, 1.442695
    %v1796 = vpow.pop %v1795
    %v1797 = vadd.f32 %v1796, 1.0
    %v1798 = vrcp.pop %v1797
    %v1799 = vmul.f32 %v1797, %v1798
    %v1800 = vsub.f32 1.0, %v1799
    %v1801 = vmul.f32 %v1798, %v1800
    %v1802 = vadd.f32 %v1798, %v1801
    %vm1803 = vweird.f32 %v1797
    %vm1804 = vweird.f32 %v1798
    %vm1805 = vmor %vm1803, %vm1804
    %v1806 = vsel %vm1805, %v1798, %v1802
    %v1807 = vand.u32 2147483647, %v1797
    %vm1808 = vcmp.eq.f32.partialorder %v1807, 8.507059e+37
    %v1809 = vand.u32 %v1797, 2147483648
    %v1810 = vor.u32 1.1754944e-38, %v1809
    %v1811 = vsel %vm1808, %v1810, %v1806
    %v1812 = vmul.f32 1.0, %v1811
    %v1813 = vrot.slane %v1771, 2
    %v1815 = vtanh.pop %v1813
    %v1816 = vrot.slane %v1771, 3
    %v1818 = vxor.u32 %v1816, 2147483648
    %v1819 = vmul.f32 %v1818, 1.442695
    %v1820 = vpow.pop %v1819
    %v1821 = vadd.f32 %v1820, 1.0
    %v1822 = vrcp.pop %v1821
    %v1823 = vmul.f32 %v1821, %v1822
    %v1824 = vsub.f32 1.0, %v1823
    %v1825 = vmul.f32 %v1822, %v1824
    %v1826 = vadd.f32 %v1822, %v1825
    %vm1827 = vweird.f32 %v1821
    %vm1828 = vweird.f32 %v1822
    %vm1829 = vmor %vm1827, %vm1828
    %v1830 = vsel %vm1829, %v1822, %v1826
    %v1831 = vand.u32 2147483647, %v1821
    %vm1832 = vcmp.eq.f32.partialorder %v1831, 8.507059e+37
    %v1833 = vand.u32 %v1821, 2147483648
    %v1834 = vor.u32 1.1754944e-38, %v1833
    %v1835 = vsel %vm1832, %v1834, %v1830
    %v1836 = vmul.f32 1.0, %v1835
    %v1837 = vmul.f32 %v1812, %v1591
    %v1838 = vmul.f32 %v1790, %v1815
    %v1839 = vadd.f32 %v1837, %v1838
    %v1840 = vtanh.pop %v1839
    %v1841 = vmul.f32 %v1836, %v1840
    %1842 = vst [vmem:[#allocation12 + $0x6] sm:$0x1] %v1841
    %s1843 = sld [smem:[#allocation2 + $0x7]]
    %s1844 = sshra.s32 %s1843, 3
    %s1845 = sand.u32 %s1843, 7
    %s1846 = sshra.s32 %s1843, 3
    %s1847 = sand.u32 %s1843, 7
    %s1848 = smul.u32 %s1844, 4
    %s1849 = smul.u32 %s1848, 8
    %s1850 = sadd.s32 %s1849, %s1847
    %s1851 = scalar_lea.vmem [#allocation8], %s1850
    %v1852 = vld [vmem:[%s1851] ss:$8 sm:$0xf]
    %s1853 = sld [smem:[#allocation6 + $0x7]]
    %s1854 = sshra.s32 %s1853, 3
    %s1855 = sand.u32 %s1853, 7
    %s1856 = sshra.s32 %s1853, 3
    %s1857 = sand.u32 %s1853, 7
    %s1858 = smul.u32 %s1854, 4
    %s1859 = smul.u32 %s1858, 8
    %s1860 = sadd.s32 %s1859, %s1857
    %s1861 = scalar_lea.vmem [#allocation9], %s1860
    %v1862 = vld [vmem:[%s1861] ss:$8 sm:$0xf]
    %v1863 = vadd.f32 %v1852, %v1862
    %v1864 = vld [vmem:[#allocation11] sm:$0xff]
    %v1865 = vld [vmem:[#allocation11 + $0x8] sm:$0xff]
    %v1866 = vld [vmem:[#allocation11 + $0x10] sm:$0xff]
    %v1867 = vld [vmem:[#allocation11 + $0x18] sm:$0xff]
    %v1868 = vld [vmem:[#allocation11 + $0x20] sm:$0xff]
    %v1869 = vld [vmem:[#allocation11 + $0x28] sm:$0xff]
    %v1870 = vld [vmem:[#allocation11 + $0x30] sm:$0xff]
    %v1871 = vld [vmem:[#allocation11 + $0x38] sm:$0xff]
    %v1872 = vld [vmem:[#allocation11 + $0x40] sm:$0xff]
    %v1873 = vld [vmem:[#allocation11 + $0x48] sm:$0xff]
    %v1874 = vld [vmem:[#allocation11 + $0x50] sm:$0xff]
    %v1875 = vld [vmem:[#allocation11 + $0x58] sm:$0xff]
    %v1876 = vld [vmem:[#allocation11 + $0x60] sm:$0xff]
    %v1877 = vld [vmem:[#allocation11 + $0x68] sm:$0xff]
    %v1878 = vld [vmem:[#allocation11 + $0x70] sm:$0xff]
    %v1879 = vld [vmem:[#allocation11 + $0x78] sm:$0xff]
    %v1880 = vld [vmem:[#allocation11 + $0x80] sm:$0xff]
    %v1881 = vld [vmem:[#allocation11 + $0x88] sm:$0xff]
    %v1882 = vld [vmem:[#allocation11 + $0x90] sm:$0xff]
    %v1883 = vld [vmem:[#allocation11 + $0x98] sm:$0xff]
    %v1884 = vld [vmem:[#allocation11 + $0xa0] sm:$0xff]
    %v1885 = vld [vmem:[#allocation11 + $0xa8] sm:$0xff]
    %v1886 = vld [vmem:[#allocation11 + $0xb0] sm:$0xff]
    %v1887 = vld [vmem:[#allocation11 + $0xb8] sm:$0xff]
    %v1888 = vld [vmem:[#allocation11 + $0xc0] sm:$0xff]
    %v1889 = vld [vmem:[#allocation11 + $0xc8] sm:$0xff]
    %v1890 = vld [vmem:[#allocation11 + $0xd0] sm:$0xff]
    %v1891 = vld [vmem:[#allocation11 + $0xd8] sm:$0xff]
    %v1892 = vld [vmem:[#allocation11 + $0xe0] sm:$0xff]
    %v1893 = vld [vmem:[#allocation11 + $0xe8] sm:$0xff]
    %v1894 = vld [vmem:[#allocation11 + $0xf0] sm:$0xff]
    %v1895 = vld [vmem:[#allocation11 + $0xf8] sm:$0xff]
    %v1896 = vld [vmem:[#allocation11 + $0x100] sm:$0xff]
    %v1897 = vld [vmem:[#allocation11 + $0x108] sm:$0xff]
    %v1898 = vld [vmem:[#allocation11 + $0x110] sm:$0xff]
    %v1899 = vld [vmem:[#allocation11 + $0x118] sm:$0xff]
    %v1900 = vld [vmem:[#allocation11 + $0x120] sm:$0xff]
    %v1901 = vld [vmem:[#allocation11 + $0x128] sm:$0xff]
    %v1902 = vld [vmem:[#allocation11 + $0x130] sm:$0xff]
    %v1903 = vld [vmem:[#allocation11 + $0x138] sm:$0xff]
    %v1904 = vld [vmem:[#allocation11 + $0x140] sm:$0xff]
    %v1905 = vld [vmem:[#allocation11 + $0x148] sm:$0xff]
    %v1906 = vld [vmem:[#allocation11 + $0x150] sm:$0xff]
    %v1907 = vld [vmem:[#allocation11 + $0x158] sm:$0xff]
    %v1908 = vld [vmem:[#allocation11 + $0x160] sm:$0xff]
    %v1909 = vld [vmem:[#allocation11 + $0x168] sm:$0xff]
    %v1910 = vld [vmem:[#allocation11 + $0x170] sm:$0xff]
    %v1911 = vld [vmem:[#allocation11 + $0x178] sm:$0xff]
    %v1912 = vld [vmem:[#allocation11 + $0x180] sm:$0xff]
    %v1913 = vld [vmem:[#allocation11 + $0x188] sm:$0xff]
    %v1914 = vld [vmem:[#allocation11 + $0x190] sm:$0xff]
    %v1915 = vld [vmem:[#allocation11 + $0x198] sm:$0xff]
    %v1916 = vld [vmem:[#allocation11 + $0x1a0] sm:$0xff]
    %v1917 = vld [vmem:[#allocation11 + $0x1a8] sm:$0xff]
    %v1918 = vld [vmem:[#allocation11 + $0x1b0] sm:$0xff]
    %v1919 = vld [vmem:[#allocation11 + $0x1b8] sm:$0xff]
    %v1920 = vld [vmem:[#allocation11 + $0x1c0] sm:$0xff]
    %v1921 = vld [vmem:[#allocation11 + $0x1c8] sm:$0xff]
    %v1922 = vld [vmem:[#allocation11 + $0x1d0] sm:$0xff]
    %v1923 = vld [vmem:[#allocation11 + $0x1d8] sm:$0xff]
    %v1924 = vld [vmem:[#allocation11 + $0x1e0] sm:$0xff]
    %v1925 = vld [vmem:[#allocation11 + $0x1e8] sm:$0xff]
    %v1926 = vld [vmem:[#allocation11 + $0x1f0] sm:$0xff]
    %v1927 = vld [vmem:[#allocation11 + $0x1f8] sm:$0xff]
    %1928 = vmatpush.msra.mxu0 %v1924
    %1929 = vmatpush.msra.mxu0 %v1920
    %1930 = vmatpush.msra.mxu0 %v1916
    %1931 = vmatpush.msra.mxu0 %v1912
    %1932 = vmatpush.msra.mxu0 %v1908
    %1933 = vmatpush.msra.mxu0 %v1904
    %1934 = vmatpush.msra.mxu0 %v1900
    %1935 = vmatpush.msra.mxu0 %v1896
    %1936 = vmatpush.msra.mxu0 %v1892
    %1937 = vmatpush.msra.mxu0 %v1888
    %1938 = vmatpush.msra.mxu0 %v1884
    %1939 = vmatpush.msra.mxu0 %v1880
    %1940 = vmatpush.msra.mxu0 %v1876
    %1941 = vmatpush.msra.mxu0 %v1872
    %1942 = vmatpush.msra.mxu0 %v1868
    %1943 = vmatpush.msra.mxu0 %v1864
    %1944 = vmatmul.f32.gmra.mxu0 %v1841
    %v1945 = vpop.f32.mrf.mxu0
    %v1946 = vadd.f32 0.0, %v1945
    %1947 = vdwg.mxu0
    %1948 = vmatpush.msra.mxu0 %v1925
    %1949 = vmatpush.msra.mxu0 %v1921
    %1950 = vmatpush.msra.mxu0 %v1917
    %1951 = vmatpush.msra.mxu0 %v1913
    %1952 = vmatpush.msra.mxu0 %v1909
    %1953 = vmatpush.msra.mxu0 %v1905
    %1954 = vmatpush.msra.mxu0 %v1901
    %1955 = vmatpush.msra.mxu0 %v1897
    %1956 = vmatpush.msra.mxu0 %v1893
    %1957 = vmatpush.msra.mxu0 %v1889
    %1958 = vmatpush.msra.mxu0 %v1885
    %1959 = vmatpush.msra.mxu0 %v1881
    %1960 = vmatpush.msra.mxu0 %v1877
    %1961 = vmatpush.msra.mxu0 %v1873
    %1962 = vmatpush.msra.mxu0 %v1869
    %1963 = vmatpush.msra.mxu0 %v1865
    %1964 = vmatmul.f32.gmra.mxu0 %v1841
    %v1965 = vpop.f32.mrf.mxu0
    %v1966 = vadd.f32 0.0, %v1965
    %1967 = vdwg.mxu0
    %1968 = vmatpush.msra.mxu0 %v1926
    %1969 = vmatpush.msra.mxu0 %v1922
    %1970 = vmatpush.msra.mxu0 %v1918
    %1971 = vmatpush.msra.mxu0 %v1914
    %1972 = vmatpush.msra.mxu0 %v1910
    %1973 = vmatpush.msra.mxu0 %v1906
    %1974 = vmatpush.msra.mxu0 %v1902
    %1975 = vmatpush.msra.mxu0 %v1898
    %1976 = vmatpush.msra.mxu0 %v1894
    %1977 = vmatpush.msra.mxu0 %v1890
    %1978 = vmatpush.msra.mxu0 %v1886
    %1979 = vmatpush.msra.mxu0 %v1882
    %1980 = vmatpush.msra.mxu0 %v1878
    %1981 = vmatpush.msra.mxu0 %v1874
    %1982 = vmatpush.msra.mxu0 %v1870
    %1983 = vmatpush.msra.mxu0 %v1866
    %1984 = vmatmul.f32.gmra.mxu0 %v1841
    %v1985 = vpop.f32.mrf.mxu0
    %v1986 = vadd.f32 0.0, %v1985
    %1987 = vdwg.mxu0
    %1988 = vmatpush.msra.mxu0 %v1927
    %1989 = vmatpush.msra.mxu0 %v1923
    %1990 = vmatpush.msra.mxu0 %v1919
    %1991 = vmatpush.msra.mxu0 %v1915
    %1992 = vmatpush.msra.mxu0 %v1911
    %1993 = vmatpush.msra.mxu0 %v1907
    %1994 = vmatpush.msra.mxu0 %v1903
    %1995 = vmatpush.msra.mxu0 %v1899
    %1996 = vmatpush.msra.mxu0 %v1895
    %1997 = vmatpush.msra.mxu0 %v1891
    %1998 = vmatpush.msra.mxu0 %v1887
    %1999 = vmatpush.msra.mxu0 %v1883
    %2000 = vmatpush.msra.mxu0 %v1879
    %2001 = vmatpush.msra.mxu0 %v1875
    %2002 = vmatpush.msra.mxu0 %v1871
    %2003 = vmatpush.msra.mxu0 %v1867
    %2004 = vmatmul.f32.gmra.mxu0 %v1841
    %v2005 = vpop.f32.mrf.mxu0
    %v2006 = vadd.f32 0.0, %v2005
    %2007 = vdwg.mxu0
    %v2012 = vrot.slane %v1966, 7
    %v2013 = vrot.slane %v1986, 6
    %v2014 = vrot.slane %v2006, 5
    %v2015 = vsel %vm276, %v1946, %v2012
    %v2016 = vsel %vm278, %v2013, %v2014
    %v2017 = vsel %vm280, %v2015, %v2016
    %v2019 = vadd.f32 %v1863, %v2017
    %v2020 = vxor.u32 %v2019, 2147483648
    %v2021 = vmul.f32 %v2020, 1.442695
    %v2022 = vpow.pop %v2021
    %v2023 = vadd.f32 %v2022, 1.0
    %v2024 = vrcp.pop %v2023
    %v2025 = vmul.f32 %v2023, %v2024
    %v2026 = vsub.f32 1.0, %v2025
    %v2027 = vmul.f32 %v2024, %v2026
    %v2028 = vadd.f32 %v2024, %v2027
    %vm2029 = vweird.f32 %v2023
    %vm2030 = vweird.f32 %v2024
    %vm2031 = vmor %vm2029, %vm2030
    %v2032 = vsel %vm2031, %v2024, %v2028
    %v2033 = vand.u32 2147483647, %v2023
    %vm2034 = vcmp.eq.f32.partialorder %v2033, 8.507059e+37
    %v2035 = vand.u32 %v2023, 2147483648
    %v2036 = vor.u32 1.1754944e-38, %v2035
    %v2037 = vsel %vm2034, %v2036, %v2032
    %v2038 = vmul.f32 1.0, %v2037
    %v2040 = vrot.slane %v2019, 1
    %v2042 = vxor.u32 %v2040, 2147483648
    %v2043 = vmul.f32 %v2042, 1.442695
    %v2044 = vpow.pop %v2043
    %v2045 = vadd.f32 %v2044, 1.0
    %v2046 = vrcp.pop %v2045
    %v2047 = vmul.f32 %v2045, %v2046
    %v2048 = vsub.f32 1.0, %v2047
    %v2049 = vmul.f32 %v2046, %v2048
    %v2050 = vadd.f32 %v2046, %v2049
    %vm2051 = vweird.f32 %v2045
    %vm2052 = vweird.f32 %v2046
    %vm2053 = vmor %vm2051, %vm2052
    %v2054 = vsel %vm2053, %v2046, %v2050
    %v2055 = vand.u32 2147483647, %v2045
    %vm2056 = vcmp.eq.f32.partialorder %v2055, 8.507059e+37
    %v2057 = vand.u32 %v2045, 2147483648
    %v2058 = vor.u32 1.1754944e-38, %v2057
    %v2059 = vsel %vm2056, %v2058, %v2054
    %v2060 = vmul.f32 1.0, %v2059
    %v2061 = vrot.slane %v2019, 2
    %v2063 = vtanh.pop %v2061
    %v2064 = vrot.slane %v2019, 3
    %v2066 = vxor.u32 %v2064, 2147483648
    %v2067 = vmul.f32 %v2066, 1.442695
    %v2068 = vpow.pop %v2067
    %v2069 = vadd.f32 %v2068, 1.0
    %v2070 = vrcp.pop %v2069
    %v2071 = vmul.f32 %v2069, %v2070
    %v2072 = vsub.f32 1.0, %v2071
    %v2073 = vmul.f32 %v2070, %v2072
    %v2074 = vadd.f32 %v2070, %v2073
    %vm2075 = vweird.f32 %v2069
    %vm2076 = vweird.f32 %v2070
    %vm2077 = vmor %vm2075, %vm2076
    %v2078 = vsel %vm2077, %v2070, %v2074
    %v2079 = vand.u32 2147483647, %v2069
    %vm2080 = vcmp.eq.f32.partialorder %v2079, 8.507059e+37
    %v2081 = vand.u32 %v2069, 2147483648
    %v2082 = vor.u32 1.1754944e-38, %v2081
    %v2083 = vsel %vm2080, %v2082, %v2078
    %v2084 = vmul.f32 1.0, %v2083
    %v2085 = vmul.f32 %v2060, %v1839
    %v2086 = vmul.f32 %v2038, %v2063
    %v2087 = vadd.f32 %v2085, %v2086
    %v2088 = vtanh.pop %v2087
    %v2089 = vmul.f32 %v2084, %v2088
    %2090 = vst [vmem:[#allocation12 + $0x7] sm:$0x1] %v2089
    %2091 = vst [vmem:[%s8] sm:$0x1] %v2089
    %2092 = vst [vmem:[%s9] sm:$0x1] %v2087
    // Predicated region
    $region50: #{_forward_impl.1} parent=1 // pred_check
      _
    $region51: #{_forward_impl.1} parent=1 // pred_check_branch
      %2094 = sbr.rel (0) target = $region53
    $region52: #{_forward_impl.1} parent=1 // pred_region
      %2096 = vsyncadd [#allocation4], 0
      %s2098 = sshll.u32 [#allocation12], 4
      %s2099 = int_to_ptr.vmem [resolvable:$true] %s2098
      %s2100 = sshll.u32 %s7, 4
      %s2101 = int_to_ptr.hbm [resolvable:$true] %s2100
      %2103 = dma.vmem_to_hbm [thread:$0]  %s2099, 128, %s2101, [#allocation4]
    $region53: #{_forward_impl.1} parent=1 // pred_fallthru
      _
    // Predicated region
    $region54: #{_forward_impl.1} parent=1 // pred_check
      _
    $region55: #{_forward_impl.1} parent=1 // pred_check_branch
      %2105 = sbr.rel (0) target = $region57
    $region56: #{_forward_impl.1} parent=1 // pred_region
      _
    $region57: #{_forward_impl.1} parent=1 // pred_fallthru
      _
    // Predicated region
    $region58: #{_forward_impl.1} parent=1 // pred_check
      _
    $region59: #{_forward_impl.1} parent=1 // pred_check_branch
      %2107 = sbr.rel (0) target = $region61
    $region60: #{_forward_impl.1} parent=1 // pred_region
      _
    $region61: #{_forward_impl.1} parent=1 // pred_fallthru
      _
    // Predicated region
    $region62: #{_forward_impl.1} parent=1 // pred_check
      _
    $region63: #{_forward_impl.1} parent=1 // pred_check_branch
      %2109 = sbr.rel (0) target = $region65
    $region64: #{_forward_impl.1} parent=1 // pred_region
      %2111 = dma.done [#allocation4], 128
    $region65: #{_forward_impl.1} parent=1 // pred_fallthru
      _
    // Predicated region
    $region66: #{_forward_impl.1} parent=1 // pred_check
      _
    $region67: #{_forward_impl.1} parent=1 // pred_check_branch
      %2113 = sbr.rel (0) target = $region69
    $region68: #{_forward_impl.1} parent=1 // pred_region
      _
    $region69: #{_forward_impl.1} parent=1 // pred_fallthru
      _
    // Predicated region
    $region70: #{_forward_impl.1} parent=1 // pred_check
      _
    $region71: #{_forward_impl.1} parent=1 // pred_check_branch
      %2115 = sbr.rel (0) target = $region73
    $region72: #{_forward_impl.1} parent=1 // pred_region
      _
    $region73: #{_forward_impl.1} parent=1 // pred_fallthru
      _
    %2116 = vsyncpa [#allocation3], 1
    %2117 = vsyncpa [#allocation10], 1
    %2118 = vsyncpa [#allocation4], 1
    %2119 = vsyncpa [#allocation5], 1
    %2120 = vsyncpa [#allocation7], 1

</llo_original>
